<compile_context>
chip_gen: v6e
topology: v6e:2x2x1
jax: 0.10.0
libtpu: 0.0.40
codegen_flags: <defaults>
</compile_context>

<pallas_src>
import functools

import jax
import jax.numpy as jnp
import numpy as np
from jax.experimental import pallas as pl
from jax.experimental.pallas import tpu as pltpu

_HALO_BLK = 128  # lane-block used for the right-halo read (minimum lane tile)


def _pqmf_ana_kernel(xm_ref, xh_ref, w_ref, o_ref, xw_ref, xcol_ref, *,
                     n_sub, c_taps):
    """One (batch, time-tile) grid step.

    xm_ref:   [N, T_tile]         main polyphase tile (lane-dense time)
    xh_ref:   [N, 128]            right halo (only the first C-1 lanes are used)
    w_ref:    [N, M]              analysis filters, resident across the grid
    o_ref:    [N, T_tile]         output tile (lane-dense time)
    xw_ref:   [N, T_tile + 128]   VMEM scratch: stitched window
    xcol_ref: [M, T_tile]         VMEM scratch: im2col slab
    """
    t_tile = xm_ref.shape[-1]

    # Stitch main tile + right halo into one contiguous lane window.
    xw_ref[:, :t_tile] = xm_ref[...]
    xw_ref[:, t_tile:] = xh_ref[...]

    # im2col: row block c (rows c*N .. c*N+N-1) is the window shifted left by
    # c lanes, i.e. xcol[c*N + r, t] = x_pad[(t0 + t)*N + c*N + r].
    for c in range(c_taps):
        xcol_ref[c * n_sub:(c + 1) * n_sub, :] = xw_ref[:, c:c + t_tile]

    # Single K = M GEMM with a lane-dense [N, T_tile] result.
    o_ref[...] = jnp.dot(
        w_ref[...], xcol_ref[...], preferred_element_type=jnp.float32
    ).astype(o_ref.dtype)


def pqmf_forward(x, weight, N, M):
    """PQMF.forward: left-pad by (M - N) zeros, then Conv1d(1, N, M, stride=N)."""
    B, c_in, T = x.shape
    assert c_in == 1 and T % N == 0 and M % N == 0
    C = M // N          # taps per polyphase branch (16 for M=64, N=4)
    H = C - 1           # halo in polyphase samples ((M - N) / N = 15)
    T_out = T // N

    # Pad the output length up to a lane tile so all blocks satisfy the
    # (8, 128) constraint; the (rare) excess is sliced off afterwards.
    T_out_pad = ((T_out + _HALO_BLK - 1) // _HALO_BLK) * _HALO_BLK
    T_tile = next((t for t in (1024, 512, 256, 128) if T_out_pad % t == 0),
                  T_out_pad)
    n_tiles = T_out_pad // T_tile

    # --- the single wrapper-side restructuring copy of the input ------------
    # Deinterleave into polyphase rows (time -> lanes); the PyTorch
    # ConstantPad1d((M-N, 0)) is exactly H leading zero lanes; right-pad so the
    # 128-lane halo block of the last tile stays in bounds.
    x_phase = x.reshape(B, T_out, N).transpose(0, 2, 1)           # [B, N, T_out]
    j_pad = n_tiles * T_tile + _HALO_BLK
    x_in = jnp.pad(x_phase, ((0, 0), (0, 0), (H, j_pad - T_out - H)))

    # Flat resident filter matrix: W[n, k] = weight[n, 0, k].
    w_flat = weight.reshape(N, M)

    kernel = functools.partial(_pqmf_ana_kernel, n_sub=N, c_taps=C)
    out = pl.pallas_call(
        kernel,
        out_shape=jax.ShapeDtypeStruct((B, N, T_out_pad), x.dtype),
        grid_spec=pltpu.PrefetchScalarGridSpec(
            num_scalar_prefetch=0,
            grid=(B, n_tiles),
            in_specs=[
                # main polyphase tile
                pl.BlockSpec((None, N, T_tile), lambda b, t: (b, 0, t)),
                # 128-lane right halo (start of the next tile), same array
                pl.BlockSpec((None, N, _HALO_BLK),
                             lambda b, t: (b, 0, (t + 1) * (T_tile // _HALO_BLK))),
                # resident filter matrix (constant index map -> loaded once)
                pl.BlockSpec((N, M), lambda b, t: (0, 0)),
            ],
            out_specs=pl.BlockSpec((None, N, T_tile), lambda b, t: (b, 0, t)),
            scratch_shapes=[
                pltpu.VMEM((N, T_tile + _HALO_BLK), jnp.float32),
                pltpu.VMEM((M, T_tile), jnp.float32),
            ],
        ),
        compiler_params=pltpu.CompilerParams(
            dimension_semantics=("parallel", "parallel")),
        cost_estimate=pl.CostEstimate(
            flops=2 * B * N * T_out_pad * M,
            transcendentals=0,
            bytes_accessed=4 * (B * N * j_pad + N * M + B * N * T_out_pad)),
    )(x_in, x_in, w_flat)

    if T_out_pad != T_out:
        out = out[:, :, :T_out]
    return out


def _make_pqmf_weights(N, M):
    # TODO(synk): the real module downloads/loads 'f_{N}_{M}.mat'; here we build
    # a deterministic cosine-modulated prototype with the same shape and 1/N
    # scaling so the script is fully self-contained.
    n = np.arange(M, dtype=np.float64)
    proto = np.hanning(M)
    k = np.arange(N, dtype=np.float64)[:, None]
    filt = proto[None, :] * np.cos(
        (2.0 * k + 1.0) * (np.pi / (2.0 * N)) * (n[None, :] - (M - 1) / 2.0)
        + (-1.0) ** k * np.pi / 4.0
    )
    filt = (filt / N).astype(np.float32)          # [N, M]
    return jnp.asarray(filt.reshape(N, 1, M))     # Conv1d weight layout [N, 1, M]


if __name__ == "__main__":
    N, M = 4, 64                  # supported (N, M) pair from the module
    B, T = 2, 16384               # T_out = 4096 -> 4 lane tiles of 1024 per batch
    key = jax.random.PRNGKey(0)
    x = jax.random.normal(key, (B, 1, T), dtype=jnp.float32)
    w = _make_pqmf_weights(N, M)

    out = jax.block_until_ready(pqmf_forward(x, w, N, M))

    # Reference: identical semantics to the PyTorch forward (pad + strided conv).
    x_pad = jnp.pad(x, ((0, 0), (0, 0), (M - N, 0)))
    ref = jax.lax.conv_general_dilated(
        x_pad, w, window_strides=(N,), padding="VALID",
        dimension_numbers=("NCH", "OIH", "NCH"),
        precision=jax.lax.Precision.HIGHEST)
    assert out.shape == (B, N, T // N), out.shape
    np.testing.assert_allclose(np.asarray(out), np.asarray(ref),
                               rtol=1e-4, atol=1e-4)

    print("KERNEL_OK")
</pallas_src>

<mosaic_0001>
module attributes {stable_mosaic.version = 11 : i64} {
  func.func @_pqmf_ana_kernel(%arg0: i32, %arg1: i32, %arg2: memref<1x4x1024xf32, #tpu.memory_space<vmem>>, %arg3: memref<1x4x128xf32, #tpu.memory_space<vmem>>, %arg4: memref<4x64xf32, #tpu.memory_space<vmem>>, %arg5: memref<1x4x1024xf32, #tpu.memory_space<vmem>>, %arg6: memref<4x1152xf32, #tpu.memory_space<vmem>>, %arg7: memref<64x1024xf32, #tpu.memory_space<vmem>>) attributes {dimension_semantics = [#tpu.dimension_semantics<parallel>, #tpu.dimension_semantics<parallel>], iteration_bounds = array<i64: 2, 4>, scalar_prefetch = 0 : i64, scratch_operands = 2 : i64, tpu.core_type = #tpu.core_type<tc>, window_params = [{transform_indices = @transform_0, window_bounds = array<i64: 1, 4, 1024>}, {transform_indices = @transform_1, window_bounds = array<i64: 1, 4, 128>}, {pipeline_mode = #tpu.pipeline_mode<synchronous>, transform_indices = @transform_2, window_bounds = array<i64: 4, 64>}, {transform_indices = @transform_3, window_bounds = array<i64: 1, 4, 1024>}]} {
    %c0 = arith.constant 0 : index
    %c0_0 = arith.constant 0 : index
    %c0_1 = arith.constant 0 : index
    %0 = vector.load %arg2[%c0, %c0_0, %c0_1] : memref<1x4x1024xf32, #tpu.memory_space<vmem>>, vector<1x4x1024xf32>
    %1 = vector.shape_cast %0 : vector<1x4x1024xf32> to vector<4x1024xf32>
    %c0_2 = arith.constant 0 : index
    %c0_3 = arith.constant 0 : index
    %2 = vector.load %arg6[%c0_2, %c0_3] : memref<4x1152xf32, #tpu.memory_space<vmem>>, vector<4x1024xf32>
    tpu.vector_store %arg6[%c0_2, %c0_3], %1 {strides = array<i32>} : memref<4x1152xf32, #tpu.memory_space<vmem>>, vector<4x1024xf32>,
    %c0_4 = arith.constant 0 : index
    %c0_5 = arith.constant 0 : index
    %c0_6 = arith.constant 0 : index
    %3 = vector.load %arg3[%c0_4, %c0_5, %c0_6] : memref<1x4x128xf32, #tpu.memory_space<vmem>>, vector<1x4x128xf32>
    %4 = vector.shape_cast %3 : vector<1x4x128xf32> to vector<4x128xf32>
    %c0_7 = arith.constant 0 : index
    %c1024 = arith.constant 1024 : index
    %5 = vector.load %arg6[%c0_7, %c1024] : memref<4x1152xf32, #tpu.memory_space<vmem>>, vector<4x128xf32>
    tpu.vector_store %arg6[%c0_7, %c1024], %4 {strides = array<i32>} : memref<4x1152xf32, #tpu.memory_space<vmem>>, vector<4x128xf32>,
    %c0_8 = arith.constant 0 : index
    %c0_9 = arith.constant 0 : index
    %6 = vector.load %arg6[%c0_8, %c0_9] : memref<4x1152xf32, #tpu.memory_space<vmem>>, vector<4x1024xf32>
    %c0_10 = arith.constant 0 : index
    %c0_11 = arith.constant 0 : index
    %7 = vector.load %arg7[%c0_10, %c0_11] : memref<64x1024xf32, #tpu.memory_space<vmem>>, vector<4x1024xf32>
    tpu.vector_store %arg7[%c0_10, %c0_11], %6 {strides = array<i32>} : memref<64x1024xf32, #tpu.memory_space<vmem>>, vector<4x1024xf32>,
    %c0_12 = arith.constant 0 : index
    %c1 = arith.constant 1 : index
    %8 = vector.load %arg6[%c0_12, %c1] : memref<4x1152xf32, #tpu.memory_space<vmem>>, vector<4x1024xf32>
    %c4 = arith.constant 4 : index
    %c0_13 = arith.constant 0 : index
    %9 = vector.load %arg7[%c4, %c0_13] : memref<64x1024xf32, #tpu.memory_space<vmem>>, vector<4x1024xf32>
    tpu.vector_store %arg7[%c4, %c0_13], %8 {strides = array<i32>} : memref<64x1024xf32, #tpu.memory_space<vmem>>, vector<4x1024xf32>,
    %c0_14 = arith.constant 0 : index
    %c2 = arith.constant 2 : index
    %10 = vector.load %arg6[%c0_14, %c2] : memref<4x1152xf32, #tpu.memory_space<vmem>>, vector<4x1024xf32>
    %c8 = arith.constant 8 : index
    %c0_15 = arith.constant 0 : index
    %11 = vector.load %arg7[%c8, %c0_15] : memref<64x1024xf32, #tpu.memory_space<vmem>>, vector<4x1024xf32>
    tpu.vector_store %arg7[%c8, %c0_15], %10 {strides = array<i32>} : memref<64x1024xf32, #tpu.memory_space<vmem>>, vector<4x1024xf32>,
    %c0_16 = arith.constant 0 : index
    %c3 = arith.constant 3 : index
    %12 = vector.load %arg6[%c0_16, %c3] : memref<4x1152xf32, #tpu.memory_space<vmem>>, vector<4x1024xf32>
    %c12 = arith.constant 12 : index
    %c0_17 = arith.constant 0 : index
    %13 = vector.load %arg7[%c12, %c0_17] : memref<64x1024xf32, #tpu.memory_space<vmem>>, vector<4x1024xf32>
    tpu.vector_store %arg7[%c12, %c0_17], %12 {strides = array<i32>} : memref<64x1024xf32, #tpu.memory_space<vmem>>, vector<4x1024xf32>,
    %c0_18 = arith.constant 0 : index
    %c4_19 = arith.constant 4 : index
    %14 = vector.load %arg6[%c0_18, %c4_19] : memref<4x1152xf32, #tpu.memory_space<vmem>>, vector<4x1024xf32>
    %c16 = arith.constant 16 : index
    %c0_20 = arith.constant 0 : index
    %15 = vector.load %arg7[%c16, %c0_20] : memref<64x1024xf32, #tpu.memory_space<vmem>>, vector<4x1024xf32>
    tpu.vector_store %arg7[%c16, %c0_20], %14 {strides = array<i32>} : memref<64x1024xf32, #tpu.memory_space<vmem>>, vector<4x1024xf32>,
    %c0_21 = arith.constant 0 : index
    %c5 = arith.constant 5 : index
    %16 = vector.load %arg6[%c0_21, %c5] : memref<4x1152xf32, #tpu.memory_space<vmem>>, vector<4x1024xf32>
    %c20 = arith.constant 20 : index
    %c0_22 = arith.constant 0 : index
    %17 = vector.load %arg7[%c20, %c0_22] : memref<64x1024xf32, #tpu.memory_space<vmem>>, vector<4x1024xf32>
    tpu.vector_store %arg7[%c20, %c0_22], %16 {strides = array<i32>} : memref<64x1024xf32, #tpu.memory_space<vmem>>, vector<4x1024xf32>,
    %c0_23 = arith.constant 0 : index
    %c6 = arith.constant 6 : index
    %18 = vector.load %arg6[%c0_23, %c6] : memref<4x1152xf32, #tpu.memory_space<vmem>>, vector<4x1024xf32>
    %c24 = arith.constant 24 : index
    %c0_24 = arith.constant 0 : index
    %19 = vector.load %arg7[%c24, %c0_24] : memref<64x1024xf32, #tpu.memory_space<vmem>>, vector<4x1024xf32>
    tpu.vector_store %arg7[%c24, %c0_24], %18 {strides = array<i32>} : memref<64x1024xf32, #tpu.memory_space<vmem>>, vector<4x1024xf32>,
    %c0_25 = arith.constant 0 : index
    %c7 = arith.constant 7 : index
    %20 = vector.load %arg6[%c0_25, %c7] : memref<4x1152xf32, #tpu.memory_space<vmem>>, vector<4x1024xf32>
    %c28 = arith.constant 28 : index
    %c0_26 = arith.constant 0 : index
    %21 = vector.load %arg7[%c28, %c0_26] : memref<64x1024xf32, #tpu.memory_space<vmem>>, vector<4x1024xf32>
    tpu.vector_store %arg7[%c28, %c0_26], %20 {strides = array<i32>} : memref<64x1024xf32, #tpu.memory_space<vmem>>, vector<4x1024xf32>,
    %c0_27 = arith.constant 0 : index
    %c8_28 = arith.constant 8 : index
    %22 = vector.load %arg6[%c0_27, %c8_28] : memref<4x1152xf32, #tpu.memory_space<vmem>>, vector<4x1024xf32>
    %c32 = arith.constant 32 : index
    %c0_29 = arith.constant 0 : index
    %23 = vector.load %arg7[%c32, %c0_29] : memref<64x1024xf32, #tpu.memory_space<vmem>>, vector<4x1024xf32>
    tpu.vector_store %arg7[%c32, %c0_29], %22 {strides = array<i32>} : memref<64x1024xf32, #tpu.memory_space<vmem>>, vector<4x1024xf32>,
    %c0_30 = arith.constant 0 : index
    %c9 = arith.constant 9 : index
    %24 = vector.load %arg6[%c0_30, %c9] : memref<4x1152xf32, #tpu.memory_space<vmem>>, vector<4x1024xf32>
    %c36 = arith.constant 36 : index
    %c0_31 = arith.constant 0 : index
    %25 = vector.load %arg7[%c36, %c0_31] : memref<64x1024xf32, #tpu.memory_space<vmem>>, vector<4x1024xf32>
    tpu.vector_store %arg7[%c36, %c0_31], %24 {strides = array<i32>} : memref<64x1024xf32, #tpu.memory_space<vmem>>, vector<4x1024xf32>,
    %c0_32 = arith.constant 0 : index
    %c10 = arith.constant 10 : index
    %26 = vector.load %arg6[%c0_32, %c10] : memref<4x1152xf32, #tpu.memory_space<vmem>>, vector<4x1024xf32>
    %c40 = arith.constant 40 : index
    %c0_33 = arith.constant 0 : index
    %27 = vector.load %arg7[%c40, %c0_33] : memref<64x1024xf32, #tpu.memory_space<vmem>>, vector<4x1024xf32>
    tpu.vector_store %arg7[%c40, %c0_33], %26 {strides = array<i32>} : memref<64x1024xf32, #tpu.memory_space<vmem>>, vector<4x1024xf32>,
    %c0_34 = arith.constant 0 : index
    %c11 = arith.constant 11 : index
    %28 = vector.load %arg6[%c0_34, %c11] : memref<4x1152xf32, #tpu.memory_space<vmem>>, vector<4x1024xf32>
    %c44 = arith.constant 44 : index
    %c0_35 = arith.constant 0 : index
    %29 = vector.load %arg7[%c44, %c0_35] : memref<64x1024xf32, #tpu.memory_space<vmem>>, vector<4x1024xf32>
    tpu.vector_store %arg7[%c44, %c0_35], %28 {strides = array<i32>} : memref<64x1024xf32, #tpu.memory_space<vmem>>, vector<4x1024xf32>,
    %c0_36 = arith.constant 0 : index
    %c12_37 = arith.constant 12 : index
    %30 = vector.load %arg6[%c0_36, %c12_37] : memref<4x1152xf32, #tpu.memory_space<vmem>>, vector<4x1024xf32>
    %c48 = arith.constant 48 : index
    %c0_38 = arith.constant 0 : index
    %31 = vector.load %arg7[%c48, %c0_38] : memref<64x1024xf32, #tpu.memory_space<vmem>>, vector<4x1024xf32>
    tpu.vector_store %arg7[%c48, %c0_38], %30 {strides = array<i32>} : memref<64x1024xf32, #tpu.memory_space<vmem>>, vector<4x1024xf32>,
    %c0_39 = arith.constant 0 : index
    %c13 = arith.constant 13 : index
    %32 = vector.load %arg6[%c0_39, %c13] : memref<4x1152xf32, #tpu.memory_space<vmem>>, vector<4x1024xf32>
    %c52 = arith.constant 52 : index
    %c0_40 = arith.constant 0 : index
    %33 = vector.load %arg7[%c52, %c0_40] : memref<64x1024xf32, #tpu.memory_space<vmem>>, vector<4x1024xf32>
    tpu.vector_store %arg7[%c52, %c0_40], %32 {strides = array<i32>} : memref<64x1024xf32, #tpu.memory_space<vmem>>, vector<4x1024xf32>,
    %c0_41 = arith.constant 0 : index
    %c14 = arith.constant 14 : index
    %34 = vector.load %arg6[%c0_41, %c14] : memref<4x1152xf32, #tpu.memory_space<vmem>>, vector<4x1024xf32>
    %c56 = arith.constant 56 : index
    %c0_42 = arith.constant 0 : index
    %35 = vector.load %arg7[%c56, %c0_42] : memref<64x1024xf32, #tpu.memory_space<vmem>>, vector<4x1024xf32>
    tpu.vector_store %arg7[%c56, %c0_42], %34 {strides = array<i32>} : memref<64x1024xf32, #tpu.memory_space<vmem>>, vector<4x1024xf32>,
    %c0_43 = arith.constant 0 : index
    %c15 = arith.constant 15 : index
    %36 = vector.load %arg6[%c0_43, %c15] : memref<4x1152xf32, #tpu.memory_space<vmem>>, vector<4x1024xf32>
    %c60 = arith.constant 60 : index
    %c0_44 = arith.constant 0 : index
    %37 = vector.load %arg7[%c60, %c0_44] : memref<64x1024xf32, #tpu.memory_space<vmem>>, vector<4x1024xf32>
    tpu.vector_store %arg7[%c60, %c0_44], %36 {strides = array<i32>} : memref<64x1024xf32, #tpu.memory_space<vmem>>, vector<4x1024xf32>,
    %c0_45 = arith.constant 0 : index
    %c0_46 = arith.constant 0 : index
    %38 = vector.load %arg4[%c0_45, %c0_46] : memref<4x64xf32, #tpu.memory_space<vmem>>, vector<4x64xf32>
    %c0_47 = arith.constant 0 : index
    %c0_48 = arith.constant 0 : index
    %39 = vector.load %arg7[%c0_47, %c0_48] : memref<64x1024xf32, #tpu.memory_space<vmem>>, vector<64x1024xf32>
    %cst = arith.constant dense<0.000000e+00> : vector<4x1024xf32>
    %40 = tpu.matmul %38, %39, %cst {dimension_numbers = #tpu.dot_dimension_numbers<[1], [0], [0], [1], [0, 0, 1, 1], [], []>} : vector<4x64xf32>, vector<64x1024xf32>, vector<4x1024xf32> -> vector<4x1024xf32>
    %c0_49 = arith.constant 0 : index
    %c0_50 = arith.constant 0 : index
    %c0_51 = arith.constant 0 : index
    %41 = vector.load %arg5[%c0_49, %c0_50, %c0_51] : memref<1x4x1024xf32, #tpu.memory_space<vmem>>, vector<1x4x1024xf32>
    %42 = vector.shape_cast %41 : vector<1x4x1024xf32> to vector<4x1024xf32>
    %43 = vector.shape_cast %40 : vector<4x1024xf32> to vector<1x4x1024xf32>
    tpu.vector_store %arg5[%c0_49, %c0_50, %c0_51], %43 {strides = array<i32>} : memref<1x4x1024xf32, #tpu.memory_space<vmem>>, vector<1x4x1024xf32>,
    return
  }
  func.func @transform_0(%arg0: i32, %arg1: i32) -> (i32, i32, i32) {
    %c0_i32 = arith.constant 0 : i32
    %c0_i32_0 = arith.constant 0 : i32
    return %arg0, %c0_i32, %arg1 : i32, i32, i32
  }
  func.func @transform_1(%arg0: i32, %arg1: i32) -> (i32, i32, i32) {
    %c1_i32 = arith.constant 1 : i32
    %0 = arith.addi %arg1, %c1_i32 : i32
    %c8_i32 = arith.constant 8 : i32
    %1 = arith.muli %0, %c8_i32 : i32
    %c0_i32 = arith.constant 0 : i32
    %c0_i32_0 = arith.constant 0 : i32
    return %arg0, %c0_i32, %1 : i32, i32, i32
  }
  func.func @transform_2(%arg0: i32, %arg1: i32) -> (i32, i32) {
    %c0_i32 = arith.constant 0 : i32
    %c0_i32_0 = arith.constant 0 : i32
    %c0_i32_1 = arith.constant 0 : i32
    return %c0_i32, %c0_i32_0 : i32, i32
  }
  func.func @transform_3(%arg0: i32, %arg1: i32) -> (i32, i32, i32) {
    %c0_i32 = arith.constant 0 : i32
    %c0_i32_0 = arith.constant 0 : i32
    return %arg0, %c0_i32, %arg1 : i32, i32, i32
  }
}

</mosaic_0001>

<llo_original>
// kernel: tpu_custom_call.1
$region0: #{tpu_custom_call.1}
  #allocation0 [shape = 'u32[]', space=smem, size = 0x4, offset = 0x4, fixed_abs, tag = 'smem constant byte address 0x4 - core index']
  #allocation1 [shape = 'u32[144,128]{1,0:T(1,128)}', space=vmem, size = 0x12000, scoped, tag = 'internal scratch']
  #allocation2 [shape = 'f32[4,1152]{1,0:T(4,128)}', space=vmem, size = 0x4800, scoped, tag = 'scratch operand']
  #allocation3 [shape = 'f32[64,1024]{1,0:T(8,128)}', space=vmem, size = 0x40000, scoped, tag = 'scratch operand']
  %s0 = inlined_call_operand.hbm [shape: f32[2,4,4224], index: 0, kind: input, shape index: {}]
  %s1 = inlined_call_operand.hbm [shape: f32[2,4,4224], index: 1, kind: input, shape index: {}]
  %s2 = inlined_call_operand.hbm [shape: f32[4,64], index: 2, kind: input, shape index: {}]
  %s3 = inlined_call_operand.hbm [shape: f32[2,4,4096], index: 3, kind: output, shape index: {}]
  %s4 = sld [smem:[#allocation0]]
  $region57: #{tpu_custom_call.1} parent=0
    _
  %s6 = ssub.s32 1, %s4
  %s7 = scalar_select 0, %s6, %s4
  $region1: #{tpu_custom_call.1} parent=0
    #allocation4 [shape = 'u8[32768]{0}', space=vmem, size = 0x8000, scoped, tag = 'input window, operand 0']
    #allocation5 [shape = 's32[2]{0}', space=sflag, size = 0x8, scoped, tag = 'scoped memory for tpu_custom_call.1']
    #allocation6 [shape = 's32[2]{0}', space=sflag, size = 0x8, scoped, tag = 'scoped memory for tpu_custom_call.1']
    #allocation7 [shape = 'u8[4096]{0}', space=vmem, size = 0x1000, scoped, tag = 'input window, operand 1']
    #allocation8 [shape = 's32[2]{0}', space=sflag, size = 0x8, scoped, tag = 'scoped memory for tpu_custom_call.1']
    #allocation9 [shape = 'u8[2048]{0}', space=vmem, size = 0x800, scoped, tag = 'input window, operand 2, single buffered']
    #allocation10 [shape = 'u8[32768]{0}', space=vmem, size = 0x8000, scoped, tag = 'output window, operand 0']
    %8 = vsyncpa [#allocation5], 0
    %s9 = scalar_lea.sflag [#allocation5], 1
    %10 = vsyncpa %s9, 0
    %11 = vsyncpa [#allocation8], 0
    %s12 = scalar_lea.sflag [#allocation8], 1
    %13 = vsyncpa %s12, 0
    %14 = vsyncpa [#allocation6], 0
    %s15 = scalar_lea.sflag [#allocation6], 1
    %16 = vsyncpa %s15, 0
    loop: start=0, step=1, limit=10
    $region2: #{tpu_custom_call.1} parent=1 // loop_pre_header
      _
    $region3: #{tpu_custom_call.1} parent=1 // loop_header
      %s18 = sphi 0, %s22
      %p19 = scmp.ge.s32.totalorder %s18, 10
      %s25 = sphi 0, %s37
      %s26 = sphi 0, %s33
      %s27 = sphi 0, %s25
      %s28 = sphi 0, %s26
      %s29 = sphi 0, %s27
      %s30 = sphi 0, %s28
      %s42 = sphi 0, %s44
      %s45 = sphi 0, %s42
      %s46 = sphi 0, %s45
      %s62 = sphi 0, %s46
      %s74 = sphi 0, %s76
      %s77 = sphi 0, %s74
      %s78 = sphi 0, %s77
      %s94 = sphi 0, %s78
      %s98 = sphi 0, %s98
      %s100 = sphi 0, %s98
      %s101 = sphi 0, %s100
      %s115 = sphi 0, %s101
      %s123 = sphi 0, %s125
      %s126 = sphi 0, %s123
      %s127 = sphi 0, %s126
      %s143 = sphi 0, %s127
    $region4: #{tpu_custom_call.1} parent=1 // loop_header_branch
      %21 = sbr.rel (%p19) target = $region8
    $region5: #{tpu_custom_call.1} parent=1 // loop_body
      %s23 = ssub.s32 %s18, 1
      %s24 = ssub.s32 %s18, 2
      %s31 = sadd.s32 1, %s26
      %p32 = scmp.ge.s32.totalorder %s31, 4
      %s33 = scalar_select %p32, 0, %s31
      %s34 = sadd.s32 1, %s25
      %s35 = scalar_select %p32, %s34, %s25
      %p36 = scmp.ge.s32.totalorder %s35, 2
      %s37 = scalar_select %p36, 0, %s35
      %s38 = ssub.s32 %s25, %s37
      %s39 = ssub.s32 %s26, %s33
      %s40 = sor.u32 %s38, %s39
      %p41 = scmp.eq.s32.totalorder %s40, 0
      %s43 = sadd.s32 %s42, 1
      %s44 = scalar_select %p41, %s42, %s43
      %p47 = pneg %p41
      %p48 = scmp.eq.s32.totalorder %s18, 7
      %p49 = por %p47, %p48
      %p50 = scmp.ne.s32.totalorder %s42, %s45
      %p51 = scmp.eq.s32.totalorder %s18, 0
      %p52 = por %p50, %p51
      %p53 = scmp.ne.s32.totalorder %s42, %s45
      %p54 = scmp.eq.s32.totalorder %s23, 7
      %p55 = por %p53, %p54
      %p56 = scmp.ne.s32.totalorder %s45, %s46
      %p57 = scmp.eq.s32.totalorder %s23, 0
      %p58 = por %p56, %p57
      %p59 = scmp.ne.s32.totalorder %s45, %s46
      %p60 = scmp.eq.s32.totalorder %s24, 7
      %p61 = por %p59, %p60
      %p63 = scmp.ne.s32.totalorder %s46, %s62
      %p64 = scmp.eq.s32.totalorder %s24, 0
      %p65 = por %p63, %p64
      %s66 = sadd.s32 %s26, 1
      %s67 = smul.u32 %s66, 8
      %s68 = sadd.s32 %s33, 1
      %s69 = smul.u32 %s68, 8
      %s70 = ssub.s32 %s25, %s37
      %s71 = ssub.s32 %s67, %s69
      %s72 = sor.u32 %s70, %s71
      %p73 = scmp.eq.s32.totalorder %s72, 0
      %s75 = sadd.s32 %s74, 1
      %s76 = scalar_select %p73, %s74, %s75
      %p79 = pneg %p73
      %p80 = scmp.eq.s32.totalorder %s18, 7
      %p81 = por %p79, %p80
      %p82 = scmp.ne.s32.totalorder %s74, %s77
      %p83 = scmp.eq.s32.totalorder %s18, 0
      %p84 = por %p82, %p83
      %p85 = scmp.ne.s32.totalorder %s74, %s77
      %p86 = scmp.eq.s32.totalorder %s23, 7
      %p87 = por %p85, %p86
      %p88 = scmp.ne.s32.totalorder %s77, %s78
      %p89 = scmp.eq.s32.totalorder %s23, 0
      %p90 = por %p88, %p89
      %p91 = scmp.ne.s32.totalorder %s77, %s78
      %p92 = scmp.eq.s32.totalorder %s24, 7
      %p93 = por %p91, %p92
      %p95 = scmp.ne.s32.totalorder %s78, %s94
      %p96 = scmp.eq.s32.totalorder %s24, 0
      %p97 = por %p95, %p96
      %s99 = sadd.s32 %s98, 1
      %p102 = scmp.eq.s32.totalorder %s18, 7
      %p103 = scmp.ne.s32.totalorder %s98, %s100
      %p104 = scmp.eq.s32.totalorder %s18, 0
      %p105 = por %p103, %p104
      %p106 = scmp.ne.s32.totalorder %s98, %s100
      %p107 = scmp.eq.s32.totalorder %s23, 7
      %p108 = por %p106, %p107
      %p109 = scmp.ne.s32.totalorder %s100, %s101
      %p110 = scmp.eq.s32.totalorder %s23, 0
      %p111 = por %p109, %p110
      %p112 = scmp.ne.s32.totalorder %s100, %s101
      %p113 = scmp.eq.s32.totalorder %s24, 7
      %p114 = por %p112, %p113
      %p116 = scmp.ne.s32.totalorder %s101, %s115
      %p117 = scmp.eq.s32.totalorder %s24, 0
      %p118 = por %p116, %p117
      %s119 = ssub.s32 %s25, %s37
      %s120 = ssub.s32 %s26, %s33
      %s121 = sor.u32 %s119, %s120
      %p122 = scmp.eq.s32.totalorder %s121, 0
      %s124 = sadd.s32 %s123, 1
      %s125 = scalar_select %p122, %s123, %s124
      %p128 = pneg %p122
      %p129 = scmp.eq.s32.totalorder %s18, 7
      %p130 = por %p128, %p129
      %p131 = scmp.ne.s32.totalorder %s123, %s126
      %p132 = scmp.eq.s32.totalorder %s18, 0
      %p133 = por %p131, %p132
      %p134 = scmp.ne.s32.totalorder %s123, %s126
      %p135 = scmp.eq.s32.totalorder %s23, 7
      %p136 = por %p134, %p135
      %p137 = scmp.ne.s32.totalorder %s126, %s127
      %p138 = scmp.eq.s32.totalorder %s23, 0
      %p139 = por %p137, %p138
      %p140 = scmp.ne.s32.totalorder %s126, %s127
      %p141 = scmp.eq.s32.totalorder %s24, 7
      %p142 = por %p140, %p141
      %p144 = scmp.ne.s32.totalorder %s127, %s143
      %p145 = scmp.eq.s32.totalorder %s24, 0
      %p146 = por %p144, %p145
      %p147 = scmp.le.s32.totalorder 1, %s18
      %p148 = scmp.lt.s32.totalorder %s18, 9
      %p149 = pnand %p147, %p148
      %p150 = pneg %p149
      // Predicated region
      $region9: #{tpu_custom_call.1} parent=5 // pred_check
        _
      $region10: #{tpu_custom_call.1} parent=5 // pred_check_branch
        %152 = sbr.rel (%p149) target = $region12
      $region11: #{tpu_custom_call.1} parent=5 // pred_region
        %s153 = ssub.s32 %s18, 1
        // Predicated region
        $region13: #{tpu_custom_call.1} parent=11 // pred_check
          %p154 = pneg %p111
        $region14: #{tpu_custom_call.1} parent=11 // pred_check_branch
          %156 = sbr.rel (%p154) target = $region16
        $region15: #{tpu_custom_call.1} parent=11 // pred_region
          %s158 = ssub.s32 64, 64
          %159 = vsyncadd [#allocation8], %s158
          %s161 = sshll.u32 [#allocation9], 4
          %s162 = int_to_ptr.vmem [resolvable:$true] %s161
          %164 = dma.hbm_to_vmem [thread:$0]  %s2, 64, %s162, [#allocation8]
        $region16: #{tpu_custom_call.1} parent=11 // pred_fallthru
          _
      $region12: #{tpu_custom_call.1} parent=5 // pred_fallthru
        _
      %p165 = scmp.lt.s32.totalorder %s18, 8
      // Predicated region
      $region17: #{tpu_custom_call.1} parent=5 // pred_check
        %p166 = pneg %p165
      $region18: #{tpu_custom_call.1} parent=5 // pred_check_branch
        %168 = sbr.rel (%p166) target = $region20
      $region19: #{tpu_custom_call.1} parent=5 // pred_region
        // Predicated region
        $region21: #{tpu_custom_call.1} parent=19 // pred_check
          %p169 = pneg %p52
        $region22: #{tpu_custom_call.1} parent=19 // pred_check_branch
          %171 = sbr.rel (%p169) target = $region24
        $region23: #{tpu_custom_call.1} parent=19 // pred_region
          %s172 = sand.u32 %s42, 1
          %s173 = scalar_lea.sflag [#allocation5], %s172
          %s174 = sand.u32 %s42, 1
          %s175 = smul.addr %s174, 32
          %s176 = scalar_lea.vmem [#allocation4], %s175
          %s177 = smul.u32 8, %s26
          %s178 = ssub.s32 33, %s177
          %p179 = scmp.lt.s32.totalorder %s178, 8
          %s180 = scalar_select %p179, %s178, 8
          %s181 = smul.u32 64, %s180
          %s183 = ssub.s32 512, %s181
          %184 = vsyncadd %s173, %s183
          %p185 = scmp.ne.s32.totalorder 0, %s181
          %s186 = smul.addr %s25, 33
          %s187 = sadd.s32 %s177, %s186
          %s188 = smul.addr %s187, 64
          %s189 = scalar_lea.hbm %s0, %s188
          %s190 = smul.u32 %s180, 4
          %s191 = sshll.u32 %s190, 4
          %s192 = sshll.u32 %s176, 4
          %s193 = int_to_ptr.vmem [resolvable:$true] %s192
          %195 = dma.hbm_to_vmem [thread:$0]  (%p185), %s189, %s191, %s193, %s173
        $region24: #{tpu_custom_call.1} parent=19 // pred_fallthru
          _
        // Predicated region
        $region25: #{tpu_custom_call.1} parent=19 // pred_check
          %p196 = pneg %p84
        $region26: #{tpu_custom_call.1} parent=19 // pred_check_branch
          %198 = sbr.rel (%p196) target = $region28
        $region27: #{tpu_custom_call.1} parent=19 // pred_region
          %s199 = sand.u32 %s18, 1
          %s200 = scalar_lea.sflag [#allocation8], %s199
          %s201 = sand.u32 %s74, 1
          %s202 = smul.addr %s201, 4
          %s203 = scalar_lea.vmem [#allocation7], %s202
          %s204 = sadd.s32 %s26, 1
          %s205 = smul.u32 %s204, 8
          %s207 = ssub.s32 64, 64
          %208 = vsyncadd %s200, %s207
          %s209 = smul.addr %s25, 33
          %s210 = sadd.s32 %s205, %s209
          %s211 = smul.addr %s210, 64
          %s212 = scalar_lea.hbm %s1, %s211
          %s214 = sshll.u32 %s203, 4
          %s215 = int_to_ptr.vmem [resolvable:$true] %s214
          %217 = dma.hbm_to_vmem [thread:$0]  %s212, 64, %s215, %s200
        $region28: #{tpu_custom_call.1} parent=19 // pred_fallthru
          _
      $region20: #{tpu_custom_call.1} parent=5 // pred_fallthru
        _
      %p218 = scmp.le.s32.totalorder 1, %s18
      %p219 = scmp.lt.s32.totalorder %s18, 9
      %p220 = pnand %p218, %p219
      %p221 = pneg %p220
      // Predicated region
      $region29: #{tpu_custom_call.1} parent=5 // pred_check
        _
      $region30: #{tpu_custom_call.1} parent=5 // pred_check_branch
        %223 = sbr.rel (%p220) target = $region32
      $region31: #{tpu_custom_call.1} parent=5 // pred_region
        %s224 = ssub.s32 %s18, 1
        %s225 = sand.u32 %s45, 1
        %s226 = scalar_lea.sflag [#allocation5], %s225
        %s227 = sand.u32 %s45, 1
        %s228 = smul.addr %s227, 32
        %s229 = scalar_lea.vmem [#allocation4], %s228
        // Predicated region
        $region33: #{tpu_custom_call.1} parent=31 // pred_check
          %p230 = pneg %p58
        $region34: #{tpu_custom_call.1} parent=31 // pred_check_branch
          %232 = sbr.rel (%p230) target = $region36
        $region35: #{tpu_custom_call.1} parent=31 // pred_region
          %233 = dma.done %s226, 512
        $region36: #{tpu_custom_call.1} parent=31 // pred_fallthru
          _
        %s234 = sand.u32 %s23, 1
        %s235 = scalar_lea.sflag [#allocation8], %s234
        %s236 = sand.u32 %s77, 1
        %s237 = smul.addr %s236, 4
        %s238 = scalar_lea.vmem [#allocation7], %s237
        // Predicated region
        $region37: #{tpu_custom_call.1} parent=31 // pred_check
          %p239 = pneg %p90
        $region38: #{tpu_custom_call.1} parent=31 // pred_check_branch
          %241 = sbr.rel (%p239) target = $region40
        $region39: #{tpu_custom_call.1} parent=31 // pred_region
          %242 = dma.done %s235, 64
        $region40: #{tpu_custom_call.1} parent=31 // pred_fallthru
          _
        // Predicated region
        $region41: #{tpu_custom_call.1} parent=31 // pred_check
          %p243 = pneg %p111
        $region42: #{tpu_custom_call.1} parent=31 // pred_check_branch
          %245 = sbr.rel (%p243) target = $region44
        $region43: #{tpu_custom_call.1} parent=31 // pred_region
          %246 = dma.done [#allocation8], 64
        $region44: #{tpu_custom_call.1} parent=31 // pred_fallthru
          _
        %s247 = sand.u32 %s45, 1
        %s248 = scalar_lea.sflag [#allocation5], %s247
        %s249 = sand.u32 %s45, 1
        %s250 = smul.addr %s249, 32
        %s251 = scalar_lea.vmem [#allocation4], %s250
        %p252 = pneg %p58
        %p253 = pneg %p55
        %s254 = sand.u32 %s23, 1
        %s255 = scalar_lea.sflag [#allocation8], %s254
        %s256 = sand.u32 %s77, 1
        %s257 = smul.addr %s256, 4
        %s258 = scalar_lea.vmem [#allocation7], %s257
        %p259 = pneg %p90
        %p260 = pneg %p87
        %p261 = pneg %p111
        %p262 = pneg %p108
        %p263 = pneg %p139
        %p264 = pneg %p136
        %s265 = sand.u32 %s126, 1
        %s266 = scalar_lea.sflag [#allocation6], %s265
        %s267 = sand.u32 %s126, 1
        %s268 = smul.addr %s267, 32
        %s269 = scalar_lea.vmem [#allocation10], %s268
        %s270 = smul.u32 8, %s28
        %s271 = ssub.s32 33, %s270
        %p272 = scmp.lt.s32.totalorder %s271, 8
        %s273 = scalar_select %p272, %s271, 8
        %s274 = smul.u32 64, %s273
        %s275 = sadd.s32 %s28, 1
        %s276 = smul.u32 %s275, 8
        %s277 = smul.u32 8, %s28
        %v278 = vld [vmem:[%s229] sm:$0xff]
        %v279 = vld [vmem:[%s229 + $0x8] sm:$0xff]
        %v280 = vld [vmem:[%s229 + $0x10] sm:$0xff]
        %v281 = vld [vmem:[%s229 + $0x18] sm:$0xff]
        %282 = vst [vmem:[#allocation2] sm:$0xff] %v278
        %283 = vst [vmem:[#allocation2 + $0x8] sm:$0xff] %v279
        %284 = vst [vmem:[#allocation2 + $0x10] sm:$0xff] %v280
        %285 = vst [vmem:[#allocation2 + $0x18] sm:$0xff] %v281
        %v286 = vld [vmem:[%s238] sm:$0xf]
        %287 = vst [vmem:[#allocation2 + $0x20] sm:$0xf] %v286
        %v288 = vld [vmem:[#allocation2] sm:$0xff]
        %v289 = vld [vmem:[#allocation2 + $0x8] sm:$0xff]
        %v290 = vld [vmem:[#allocation2 + $0x10] sm:$0xff]
        %v291 = vld [vmem:[#allocation2 + $0x18] sm:$0xff]
        %v296 = vcombine.high %v288, %v288
        %v297 = vcombine.high %v289, %v289
        %v298 = vcombine.high %v290, %v290
        %v299 = vcombine.high %v291, %v291
        %304 = vst [vmem:[#allocation3] sm:$0xf] %v288
        %305 = vst [vmem:[#allocation3 + $0x8] sm:$0xf] %v296
        %306 = vst [vmem:[#allocation3 + $0x10] sm:$0xf] %v289
        %307 = vst [vmem:[#allocation3 + $0x18] sm:$0xf] %v297
        %308 = vst [vmem:[#allocation3 + $0x20] sm:$0xf] %v290
        %309 = vst [vmem:[#allocation3 + $0x28] sm:$0xf] %v298
        %310 = vst [vmem:[#allocation3 + $0x30] sm:$0xf] %v291
        %311 = vst [vmem:[#allocation3 + $0x38] sm:$0xf] %v299
        %v312 = vld [vmem:[#allocation2] sm:$0xff]
        %v313 = vld [vmem:[#allocation2 + $0x8] sm:$0xff]
        %v314 = vld [vmem:[#allocation2 + $0x10] sm:$0xff]
        %v315 = vld [vmem:[#allocation2 + $0x18] sm:$0xff]
        %v316 = vld [vmem:[#allocation2 + $0x20] sm:$0xf]
        %v322 = vcombine.low %v312, %v312
        %v323 = vcombine.low %v313, %v313
        %v324 = vcombine.low %v314, %v314
        %v325 = vcombine.low %v315, %v315
        %v326 = vcombine.low %v316, %v316
        %327 = vrot.lane.b32.xlu0 %v322, 127
        %v328 = vpop.permute.xlu0 %327
        %329 = vrot.lane.b32.xlu0 %v312, 127
        %v330 = vpop.permute.xlu0 %329
        %331 = vrot.lane.b32.xlu0 %v323, 127
        %v332 = vpop.permute.xlu0 %331
        %333 = vrot.lane.b32.xlu0 %v313, 127
        %v334 = vpop.permute.xlu0 %333
        %335 = vrot.lane.b32.xlu0 %v324, 127
        %v336 = vpop.permute.xlu0 %335
        %337 = vrot.lane.b32.xlu0 %v314, 127
        %v338 = vpop.permute.xlu0 %337
        %339 = vrot.lane.b32.xlu0 %v325, 127
        %v340 = vpop.permute.xlu0 %339
        %341 = vrot.lane.b32.xlu0 %v315, 127
        %v342 = vpop.permute.xlu0 %341
        %343 = vrot.lane.b32.xlu0 %v326, 127
        %v344 = vpop.permute.xlu0 %343
        %vm345 = vcmask 1039360
        %v346 = vsel %vm345, %v328, %v330
        %v347 = vsel %vm345, %v330, %v332
        %v348 = vsel %vm345, %v332, %v334
        %v349 = vsel %vm345, %v334, %v336
        %v350 = vsel %vm345, %v336, %v338
        %v351 = vsel %vm345, %v338, %v340
        %v352 = vsel %vm345, %v340, %v342
        %v353 = vsel %vm345, %v342, %v344
        %362 = vst [vmem:[#allocation3] sm:$0xf0] %v346
        %363 = vst [vmem:[#allocation3 + $0x8] sm:$0xf0] %v347
        %364 = vst [vmem:[#allocation3 + $0x10] sm:$0xf0] %v348
        %365 = vst [vmem:[#allocation3 + $0x18] sm:$0xf0] %v349
        %366 = vst [vmem:[#allocation3 + $0x20] sm:$0xf0] %v350
        %367 = vst [vmem:[#allocation3 + $0x28] sm:$0xf0] %v351
        %368 = vst [vmem:[#allocation3 + $0x30] sm:$0xf0] %v352
        %369 = vst [vmem:[#allocation3 + $0x38] sm:$0xf0] %v353
        %v370 = vld [vmem:[#allocation2] sm:$0xff]
        %v371 = vld [vmem:[#allocation2 + $0x8] sm:$0xff]
        %v372 = vld [vmem:[#allocation2 + $0x10] sm:$0xff]
        %v373 = vld [vmem:[#allocation2 + $0x18] sm:$0xff]
        %v374 = vld [vmem:[#allocation2 + $0x20] sm:$0xf]
        %v380 = vcombine.high %v370, %v370
        %v381 = vcombine.high %v371, %v371
        %v382 = vcombine.high %v372, %v372
        %v383 = vcombine.high %v373, %v373
        %384 = vrot.lane.b32.xlu0 %v370, 126
        %v385 = vpop.permute.xlu0 %384
        %386 = vrot.lane.b32.xlu0 %v380, 126
        %v387 = vpop.permute.xlu0 %386
        %388 = vrot.lane.b32.xlu0 %v371, 126
        %v389 = vpop.permute.xlu0 %388
        %390 = vrot.lane.b32.xlu0 %v381, 126
        %v391 = vpop.permute.xlu0 %390
        %392 = vrot.lane.b32.xlu0 %v372, 126
        %v393 = vpop.permute.xlu0 %392
        %394 = vrot.lane.b32.xlu0 %v382, 126
        %v395 = vpop.permute.xlu0 %394
        %396 = vrot.lane.b32.xlu0 %v373, 126
        %v397 = vpop.permute.xlu0 %396
        %398 = vrot.lane.b32.xlu0 %v383, 126
        %v399 = vpop.permute.xlu0 %398
        %400 = vrot.lane.b32.xlu0 %v374, 126
        %v401 = vpop.permute.xlu0 %400
        %vm402 = vcmask 1031168
        %v403 = vsel %vm402, %v385, %v387
        %v404 = vsel %vm402, %v387, %v389
        %v405 = vsel %vm402, %v389, %v391
        %v406 = vsel %vm402, %v391, %v393
        %v407 = vsel %vm402, %v393, %v395
        %v408 = vsel %vm402, %v395, %v397
        %v409 = vsel %vm402, %v397, %v399
        %v410 = vsel %vm402, %v399, %v401
        %419 = vst [vmem:[#allocation3 + $0x40] sm:$0xf] %v403
        %420 = vst [vmem:[#allocation3 + $0x48] sm:$0xf] %v404
        %421 = vst [vmem:[#allocation3 + $0x50] sm:$0xf] %v405
        %422 = vst [vmem:[#allocation3 + $0x58] sm:$0xf] %v406
        %423 = vst [vmem:[#allocation3 + $0x60] sm:$0xf] %v407
        %424 = vst [vmem:[#allocation3 + $0x68] sm:$0xf] %v408
        %425 = vst [vmem:[#allocation3 + $0x70] sm:$0xf] %v409
        %426 = vst [vmem:[#allocation3 + $0x78] sm:$0xf] %v410
        %v427 = vld [vmem:[#allocation2] sm:$0xff]
        %v428 = vld [vmem:[#allocation2 + $0x8] sm:$0xff]
        %v429 = vld [vmem:[#allocation2 + $0x10] sm:$0xff]
        %v430 = vld [vmem:[#allocation2 + $0x18] sm:$0xff]
        %v431 = vld [vmem:[#allocation2 + $0x20] sm:$0xf]
        %v437 = vcombine.low %v427, %v427
        %v438 = vcombine.low %v428, %v428
        %v439 = vcombine.low %v429, %v429
        %v440 = vcombine.low %v430, %v430
        %v441 = vcombine.low %v431, %v431
        %442 = vrot.lane.b32.xlu0 %v437, 125
        %v443 = vpop.permute.xlu0 %442
        %444 = vrot.lane.b32.xlu0 %v427, 125
        %v445 = vpop.permute.xlu0 %444
        %446 = vrot.lane.b32.xlu0 %v438, 125
        %v447 = vpop.permute.xlu0 %446
        %448 = vrot.lane.b32.xlu0 %v428, 125
        %v449 = vpop.permute.xlu0 %448
        %450 = vrot.lane.b32.xlu0 %v439, 125
        %v451 = vpop.permute.xlu0 %450
        %452 = vrot.lane.b32.xlu0 %v429, 125
        %v453 = vpop.permute.xlu0 %452
        %454 = vrot.lane.b32.xlu0 %v440, 125
        %v455 = vpop.permute.xlu0 %454
        %456 = vrot.lane.b32.xlu0 %v430, 125
        %v457 = vpop.permute.xlu0 %456
        %458 = vrot.lane.b32.xlu0 %v441, 125
        %v459 = vpop.permute.xlu0 %458
        %vm460 = vcmask 1022976
        %v461 = vsel %vm460, %v443, %v445
        %v462 = vsel %vm460, %v445, %v447
        %v463 = vsel %vm460, %v447, %v449
        %v464 = vsel %vm460, %v449, %v451
        %v465 = vsel %vm460, %v451, %v453
        %v466 = vsel %vm460, %v453, %v455
        %v467 = vsel %vm460, %v455, %v457
        %v468 = vsel %vm460, %v457, %v459
        %477 = vst [vmem:[#allocation3 + $0x40] sm:$0xf0] %v461
        %478 = vst [vmem:[#allocation3 + $0x48] sm:$0xf0] %v462
        %479 = vst [vmem:[#allocation3 + $0x50] sm:$0xf0] %v463
        %480 = vst [vmem:[#allocation3 + $0x58] sm:$0xf0] %v464
        %481 = vst [vmem:[#allocation3 + $0x60] sm:$0xf0] %v465
        %482 = vst [vmem:[#allocation3 + $0x68] sm:$0xf0] %v466
        %483 = vst [vmem:[#allocation3 + $0x70] sm:$0xf0] %v467
        %484 = vst [vmem:[#allocation3 + $0x78] sm:$0xf0] %v468
        %v485 = vld [vmem:[#allocation2] sm:$0xff]
        %v486 = vld [vmem:[#allocation2 + $0x8] sm:$0xff]
        %v487 = vld [vmem:[#allocation2 + $0x10] sm:$0xff]
        %v488 = vld [vmem:[#allocation2 + $0x18] sm:$0xff]
        %v489 = vld [vmem:[#allocation2 + $0x20] sm:$0xf]
        %v495 = vcombine.high %v485, %v485
        %v496 = vcombine.high %v486, %v486
        %v497 = vcombine.high %v487, %v487
        %v498 = vcombine.high %v488, %v488
        %499 = vrot.lane.b32.xlu0 %v485, 124
        %v500 = vpop.permute.xlu0 %499
        %501 = vrot.lane.b32.xlu0 %v495, 124
        %v502 = vpop.permute.xlu0 %501
        %503 = vrot.lane.b32.xlu0 %v486, 124
        %v504 = vpop.permute.xlu0 %503
        %505 = vrot.lane.b32.xlu0 %v496, 124
        %v506 = vpop.permute.xlu0 %505
        %507 = vrot.lane.b32.xlu0 %v487, 124
        %v508 = vpop.permute.xlu0 %507
        %509 = vrot.lane.b32.xlu0 %v497, 124
        %v510 = vpop.permute.xlu0 %509
        %511 = vrot.lane.b32.xlu0 %v488, 124
        %v512 = vpop.permute.xlu0 %511
        %513 = vrot.lane.b32.xlu0 %v498, 124
        %v514 = vpop.permute.xlu0 %513
        %515 = vrot.lane.b32.xlu0 %v489, 124
        %v516 = vpop.permute.xlu0 %515
        %vm517 = vcmask 1014784
        %v518 = vsel %vm517, %v500, %v502
        %v519 = vsel %vm517, %v502, %v504
        %v520 = vsel %vm517, %v504, %v506
        %v521 = vsel %vm517, %v506, %v508
        %v522 = vsel %vm517, %v508, %v510
        %v523 = vsel %vm517, %v510, %v512
        %v524 = vsel %vm517, %v512, %v514
        %v525 = vsel %vm517, %v514, %v516
        %534 = vst [vmem:[#allocation3 + $0x80] sm:$0xf] %v518
        %535 = vst [vmem:[#allocation3 + $0x88] sm:$0xf] %v519
        %536 = vst [vmem:[#allocation3 + $0x90] sm:$0xf] %v520
        %537 = vst [vmem:[#allocation3 + $0x98] sm:$0xf] %v521
        %538 = vst [vmem:[#allocation3 + $0xa0] sm:$0xf] %v522
        %539 = vst [vmem:[#allocation3 + $0xa8] sm:$0xf] %v523
        %540 = vst [vmem:[#allocation3 + $0xb0] sm:$0xf] %v524
        %541 = vst [vmem:[#allocation3 + $0xb8] sm:$0xf] %v525
        %v542 = vld [vmem:[#allocation2] sm:$0xff]
        %v543 = vld [vmem:[#allocation2 + $0x8] sm:$0xff]
        %v544 = vld [vmem:[#allocation2 + $0x10] sm:$0xff]
        %v545 = vld [vmem:[#allocation2 + $0x18] sm:$0xff]
        %v546 = vld [vmem:[#allocation2 + $0x20] sm:$0xf]
        %v552 = vcombine.low %v542, %v542
        %v553 = vcombine.low %v543, %v543
        %v554 = vcombine.low %v544, %v544
        %v555 = vcombine.low %v545, %v545
        %v556 = vcombine.low %v546, %v546
        %557 = vrot.lane.b32.xlu0 %v552, 123
        %v558 = vpop.permute.xlu0 %557
        %559 = vrot.lane.b32.xlu0 %v542, 123
        %v560 = vpop.permute.xlu0 %559
        %561 = vrot.lane.b32.xlu0 %v553, 123
        %v562 = vpop.permute.xlu0 %561
        %563 = vrot.lane.b32.xlu0 %v543, 123
        %v564 = vpop.permute.xlu0 %563
        %565 = vrot.lane.b32.xlu0 %v554, 123
        %v566 = vpop.permute.xlu0 %565
        %567 = vrot.lane.b32.xlu0 %v544, 123
        %v568 = vpop.permute.xlu0 %567
        %569 = vrot.lane.b32.xlu0 %v555, 123
        %v570 = vpop.permute.xlu0 %569
        %571 = vrot.lane.b32.xlu0 %v545, 123
        %v572 = vpop.permute.xlu0 %571
        %573 = vrot.lane.b32.xlu0 %v556, 123
        %v574 = vpop.permute.xlu0 %573
        %vm575 = vcmask 1006592
        %v576 = vsel %vm575, %v558, %v560
        %v577 = vsel %vm575, %v560, %v562
        %v578 = vsel %vm575, %v562, %v564
        %v579 = vsel %vm575, %v564, %v566
        %v580 = vsel %vm575, %v566, %v568
        %v581 = vsel %vm575, %v568, %v570
        %v582 = vsel %vm575, %v570, %v572
        %v583 = vsel %vm575, %v572, %v574
        %592 = vst [vmem:[#allocation3 + $0x80] sm:$0xf0] %v576
        %593 = vst [vmem:[#allocation3 + $0x88] sm:$0xf0] %v577
        %594 = vst [vmem:[#allocation3 + $0x90] sm:$0xf0] %v578
        %595 = vst [vmem:[#allocation3 + $0x98] sm:$0xf0] %v579
        %596 = vst [vmem:[#allocation3 + $0xa0] sm:$0xf0] %v580
        %597 = vst [vmem:[#allocation3 + $0xa8] sm:$0xf0] %v581
        %598 = vst [vmem:[#allocation3 + $0xb0] sm:$0xf0] %v582
        %599 = vst [vmem:[#allocation3 + $0xb8] sm:$0xf0] %v583
        %v600 = vld [vmem:[#allocation2] sm:$0xff]
        %v601 = vld [vmem:[#allocation2 + $0x8] sm:$0xff]
        %v602 = vld [vmem:[#allocation2 + $0x10] sm:$0xff]
        %v603 = vld [vmem:[#allocation2 + $0x18] sm:$0xff]
        %v604 = vld [vmem:[#allocation2 + $0x20] sm:$0xf]
        %v610 = vcombine.high %v600, %v600
        %v611 = vcombine.high %v601, %v601
        %v612 = vcombine.high %v602, %v602
        %v613 = vcombine.high %v603, %v603
        %614 = vrot.lane.b32.xlu0 %v600, 122
        %v615 = vpop.permute.xlu0 %614
        %616 = vrot.lane.b32.xlu0 %v610, 122
        %v617 = vpop.permute.xlu0 %616
        %618 = vrot.lane.b32.xlu0 %v601, 122
        %v619 = vpop.permute.xlu0 %618
        %620 = vrot.lane.b32.xlu0 %v611, 122
        %v621 = vpop.permute.xlu0 %620
        %622 = vrot.lane.b32.xlu0 %v602, 122
        %v623 = vpop.permute.xlu0 %622
        %624 = vrot.lane.b32.xlu0 %v612, 122
        %v625 = vpop.permute.xlu0 %624
        %626 = vrot.lane.b32.xlu0 %v603, 122
        %v627 = vpop.permute.xlu0 %626
        %628 = vrot.lane.b32.xlu0 %v613, 122
        %v629 = vpop.permute.xlu0 %628
        %630 = vrot.lane.b32.xlu0 %v604, 122
        %v631 = vpop.permute.xlu0 %630
        %vm632 = vcmask 998400
        %v633 = vsel %vm632, %v615, %v617
        %v634 = vsel %vm632, %v617, %v619
        %v635 = vsel %vm632, %v619, %v621
        %v636 = vsel %vm632, %v621, %v623
        %v637 = vsel %vm632, %v623, %v625
        %v638 = vsel %vm632, %v625, %v627
        %v639 = vsel %vm632, %v627, %v629
        %v640 = vsel %vm632, %v629, %v631
        %649 = vst [vmem:[#allocation3 + $0xc0] sm:$0xf] %v633
        %650 = vst [vmem:[#allocation3 + $0xc8] sm:$0xf] %v634
        %651 = vst [vmem:[#allocation3 + $0xd0] sm:$0xf] %v635
        %652 = vst [vmem:[#allocation3 + $0xd8] sm:$0xf] %v636
        %653 = vst [vmem:[#allocation3 + $0xe0] sm:$0xf] %v637
        %654 = vst [vmem:[#allocation3 + $0xe8] sm:$0xf] %v638
        %655 = vst [vmem:[#allocation3 + $0xf0] sm:$0xf] %v639
        %656 = vst [vmem:[#allocation3 + $0xf8] sm:$0xf] %v640
        %v657 = vld [vmem:[#allocation2] sm:$0xff]
        %v658 = vld [vmem:[#allocation2 + $0x8] sm:$0xff]
        %v659 = vld [vmem:[#allocation2 + $0x10] sm:$0xff]
        %v660 = vld [vmem:[#allocation2 + $0x18] sm:$0xff]
        %v661 = vld [vmem:[#allocation2 + $0x20] sm:$0xf]
        %v667 = vcombine.low %v657, %v657
        %v668 = vcombine.low %v658, %v658
        %v669 = vcombine.low %v659, %v659
        %v670 = vcombine.low %v660, %v660
        %v671 = vcombine.low %v661, %v661
        %672 = vrot.lane.b32.xlu0 %v667, 121
        %v673 = vpop.permute.xlu0 %672
        %674 = vrot.lane.b32.xlu0 %v657, 121
        %v675 = vpop.permute.xlu0 %674
        %676 = vrot.lane.b32.xlu0 %v668, 121
        %v677 = vpop.permute.xlu0 %676
        %678 = vrot.lane.b32.xlu0 %v658, 121
        %v679 = vpop.permute.xlu0 %678
        %680 = vrot.lane.b32.xlu0 %v669, 121
        %v681 = vpop.permute.xlu0 %680
        %682 = vrot.lane.b32.xlu0 %v659, 121
        %v683 = vpop.permute.xlu0 %682
        %684 = vrot.lane.b32.xlu0 %v670, 121
        %v685 = vpop.permute.xlu0 %684
        %686 = vrot.lane.b32.xlu0 %v660, 121
        %v687 = vpop.permute.xlu0 %686
        %688 = vrot.lane.b32.xlu0 %v671, 121
        %v689 = vpop.permute.xlu0 %688
        %vm690 = vcmask 990208
        %v691 = vsel %vm690, %v673, %v675
        %v692 = vsel %vm690, %v675, %v677
        %v693 = vsel %vm690, %v677, %v679
        %v694 = vsel %vm690, %v679, %v681
        %v695 = vsel %vm690, %v681, %v683
        %v696 = vsel %vm690, %v683, %v685
        %v697 = vsel %vm690, %v685, %v687
        %v698 = vsel %vm690, %v687, %v689
        %707 = vst [vmem:[#allocation3 + $0xc0] sm:$0xf0] %v691
        %708 = vst [vmem:[#allocation3 + $0xc8] sm:$0xf0] %v692
        %709 = vst [vmem:[#allocation3 + $0xd0] sm:$0xf0] %v693
        %710 = vst [vmem:[#allocation3 + $0xd8] sm:$0xf0] %v694
        %711 = vst [vmem:[#allocation3 + $0xe0] sm:$0xf0] %v695
        %712 = vst [vmem:[#allocation3 + $0xe8] sm:$0xf0] %v696
        %713 = vst [vmem:[#allocation3 + $0xf0] sm:$0xf0] %v697
        %714 = vst [vmem:[#allocation3 + $0xf8] sm:$0xf0] %v698
        %v715 = vld [vmem:[#allocation2] sm:$0xff]
        %v716 = vld [vmem:[#allocation2 + $0x8] sm:$0xff]
        %v717 = vld [vmem:[#allocation2 + $0x10] sm:$0xff]
        %v718 = vld [vmem:[#allocation2 + $0x18] sm:$0xff]
        %v719 = vld [vmem:[#allocation2 + $0x20] sm:$0xf]
        %v725 = vcombine.high %v715, %v715
        %v726 = vcombine.high %v716, %v716
        %v727 = vcombine.high %v717, %v717
        %v728 = vcombine.high %v718, %v718
        %729 = vrot.lane.b32.xlu0 %v715, 120
        %v730 = vpop.permute.xlu0 %729
        %731 = vrot.lane.b32.xlu0 %v725, 120
        %v732 = vpop.permute.xlu0 %731
        %733 = vrot.lane.b32.xlu0 %v716, 120
        %v734 = vpop.permute.xlu0 %733
        %735 = vrot.lane.b32.xlu0 %v726, 120
        %v736 = vpop.permute.xlu0 %735
        %737 = vrot.lane.b32.xlu0 %v717, 120
        %v738 = vpop.permute.xlu0 %737
        %739 = vrot.lane.b32.xlu0 %v727, 120
        %v740 = vpop.permute.xlu0 %739
        %741 = vrot.lane.b32.xlu0 %v718, 120
        %v742 = vpop.permute.xlu0 %741
        %743 = vrot.lane.b32.xlu0 %v728, 120
        %v744 = vpop.permute.xlu0 %743
        %745 = vrot.lane.b32.xlu0 %v719, 120
        %v746 = vpop.permute.xlu0 %745
        %vm747 = vcmask 982016
        %v748 = vsel %vm747, %v730, %v732
        %v749 = vsel %vm747, %v732, %v734
        %v750 = vsel %vm747, %v734, %v736
        %v751 = vsel %vm747, %v736, %v738
        %v752 = vsel %vm747, %v738, %v740
        %v753 = vsel %vm747, %v740, %v742
        %v754 = vsel %vm747, %v742, %v744
        %v755 = vsel %vm747, %v744, %v746
        %764 = vst [vmem:[#allocation3 + $0x100] sm:$0xf] %v748
        %765 = vst [vmem:[#allocation3 + $0x108] sm:$0xf] %v749
        %766 = vst [vmem:[#allocation3 + $0x110] sm:$0xf] %v750
        %767 = vst [vmem:[#allocation3 + $0x118] sm:$0xf] %v751
        %768 = vst [vmem:[#allocation3 + $0x120] sm:$0xf] %v752
        %769 = vst [vmem:[#allocation3 + $0x128] sm:$0xf] %v753
        %770 = vst [vmem:[#allocation3 + $0x130] sm:$0xf] %v754
        %771 = vst [vmem:[#allocation3 + $0x138] sm:$0xf] %v755
        %v772 = vld [vmem:[#allocation2] sm:$0xff]
        %v773 = vld [vmem:[#allocation2 + $0x8] sm:$0xff]
        %v774 = vld [vmem:[#allocation2 + $0x10] sm:$0xff]
        %v775 = vld [vmem:[#allocation2 + $0x18] sm:$0xff]
        %v776 = vld [vmem:[#allocation2 + $0x20] sm:$0xf]
        %v782 = vcombine.low %v772, %v772
        %v783 = vcombine.low %v773, %v773
        %v784 = vcombine.low %v774, %v774
        %v785 = vcombine.low %v775, %v775
        %v786 = vcombine.low %v776, %v776
        %787 = vrot.lane.b32.xlu0 %v782, 119
        %v788 = vpop.permute.xlu0 %787
        %789 = vrot.lane.b32.xlu0 %v772, 119
        %v790 = vpop.permute.xlu0 %789
        %791 = vrot.lane.b32.xlu0 %v783, 119
        %v792 = vpop.permute.xlu0 %791
        %793 = vrot.lane.b32.xlu0 %v773, 119
        %v794 = vpop.permute.xlu0 %793
        %795 = vrot.lane.b32.xlu0 %v784, 119
        %v796 = vpop.permute.xlu0 %795
        %797 = vrot.lane.b32.xlu0 %v774, 119
        %v798 = vpop.permute.xlu0 %797
        %799 = vrot.lane.b32.xlu0 %v785, 119
        %v800 = vpop.permute.xlu0 %799
        %801 = vrot.lane.b32.xlu0 %v775, 119
        %v802 = vpop.permute.xlu0 %801
        %803 = vrot.lane.b32.xlu0 %v786, 119
        %v804 = vpop.permute.xlu0 %803
        %vm805 = vcmask 973824
        %v806 = vsel %vm805, %v788, %v790
        %v807 = vsel %vm805, %v790, %v792
        %v808 = vsel %vm805, %v792, %v794
        %v809 = vsel %vm805, %v794, %v796
        %v810 = vsel %vm805, %v796, %v798
        %v811 = vsel %vm805, %v798, %v800
        %v812 = vsel %vm805, %v800, %v802
        %v813 = vsel %vm805, %v802, %v804
        %822 = vst [vmem:[#allocation3 + $0x100] sm:$0xf0] %v806
        %823 = vst [vmem:[#allocation3 + $0x108] sm:$0xf0] %v807
        %824 = vst [vmem:[#allocation3 + $0x110] sm:$0xf0] %v808
        %825 = vst [vmem:[#allocation3 + $0x118] sm:$0xf0] %v809
        %826 = vst [vmem:[#allocation3 + $0x120] sm:$0xf0] %v810
        %827 = vst [vmem:[#allocation3 + $0x128] sm:$0xf0] %v811
        %828 = vst [vmem:[#allocation3 + $0x130] sm:$0xf0] %v812
        %829 = vst [vmem:[#allocation3 + $0x138] sm:$0xf0] %v813
        %v830 = vld [vmem:[#allocation2] sm:$0xff]
        %v831 = vld [vmem:[#allocation2 + $0x8] sm:$0xff]
        %v832 = vld [vmem:[#allocation2 + $0x10] sm:$0xff]
        %v833 = vld [vmem:[#allocation2 + $0x18] sm:$0xff]
        %v834 = vld [vmem:[#allocation2 + $0x20] sm:$0xf]
        %v840 = vcombine.high %v830, %v830
        %v841 = vcombine.high %v831, %v831
        %v842 = vcombine.high %v832, %v832
        %v843 = vcombine.high %v833, %v833
        %844 = vrot.lane.b32.xlu0 %v830, 118
        %v845 = vpop.permute.xlu0 %844
        %846 = vrot.lane.b32.xlu0 %v840, 118
        %v847 = vpop.permute.xlu0 %846
        %848 = vrot.lane.b32.xlu0 %v831, 118
        %v849 = vpop.permute.xlu0 %848
        %850 = vrot.lane.b32.xlu0 %v841, 118
        %v851 = vpop.permute.xlu0 %850
        %852 = vrot.lane.b32.xlu0 %v832, 118
        %v853 = vpop.permute.xlu0 %852
        %854 = vrot.lane.b32.xlu0 %v842, 118
        %v855 = vpop.permute.xlu0 %854
        %856 = vrot.lane.b32.xlu0 %v833, 118
        %v857 = vpop.permute.xlu0 %856
        %858 = vrot.lane.b32.xlu0 %v843, 118
        %v859 = vpop.permute.xlu0 %858
        %860 = vrot.lane.b32.xlu0 %v834, 118
        %v861 = vpop.permute.xlu0 %860
        %vm862 = vcmask 965632
        %v863 = vsel %vm862, %v845, %v847
        %v864 = vsel %vm862, %v847, %v849
        %v865 = vsel %vm862, %v849, %v851
        %v866 = vsel %vm862, %v851, %v853
        %v867 = vsel %vm862, %v853, %v855
        %v868 = vsel %vm862, %v855, %v857
        %v869 = vsel %vm862, %v857, %v859
        %v870 = vsel %vm862, %v859, %v861
        %879 = vst [vmem:[#allocation3 + $0x140] sm:$0xf] %v863
        %880 = vst [vmem:[#allocation3 + $0x148] sm:$0xf] %v864
        %881 = vst [vmem:[#allocation3 + $0x150] sm:$0xf] %v865
        %882 = vst [vmem:[#allocation3 + $0x158] sm:$0xf] %v866
        %883 = vst [vmem:[#allocation3 + $0x160] sm:$0xf] %v867
        %884 = vst [vmem:[#allocation3 + $0x168] sm:$0xf] %v868
        %885 = vst [vmem:[#allocation3 + $0x170] sm:$0xf] %v869
        %886 = vst [vmem:[#allocation3 + $0x178] sm:$0xf] %v870
        %v887 = vld [vmem:[#allocation2] sm:$0xff]
        %v888 = vld [vmem:[#allocation2 + $0x8] sm:$0xff]
        %v889 = vld [vmem:[#allocation2 + $0x10] sm:$0xff]
        %v890 = vld [vmem:[#allocation2 + $0x18] sm:$0xff]
        %v891 = vld [vmem:[#allocation2 + $0x20] sm:$0xf]
        %v897 = vcombine.low %v887, %v887
        %v898 = vcombine.low %v888, %v888
        %v899 = vcombine.low %v889, %v889
        %v900 = vcombine.low %v890, %v890
        %v901 = vcombine.low %v891, %v891
        %902 = vrot.lane.b32.xlu0 %v897, 117
        %v903 = vpop.permute.xlu0 %902
        %904 = vrot.lane.b32.xlu0 %v887, 117
        %v905 = vpop.permute.xlu0 %904
        %906 = vrot.lane.b32.xlu0 %v898, 117
        %v907 = vpop.permute.xlu0 %906
        %908 = vrot.lane.b32.xlu0 %v888, 117
        %v909 = vpop.permute.xlu0 %908
        %910 = vrot.lane.b32.xlu0 %v899, 117
        %v911 = vpop.permute.xlu0 %910
        %912 = vrot.lane.b32.xlu0 %v889, 117
        %v913 = vpop.permute.xlu0 %912
        %914 = vrot.lane.b32.xlu0 %v900, 117
        %v915 = vpop.permute.xlu0 %914
        %916 = vrot.lane.b32.xlu0 %v890, 117
        %v917 = vpop.permute.xlu0 %916
        %918 = vrot.lane.b32.xlu0 %v901, 117
        %v919 = vpop.permute.xlu0 %918
        %vm920 = vcmask 957440
        %v921 = vsel %vm920, %v903, %v905
        %v922 = vsel %vm920, %v905, %v907
        %v923 = vsel %vm920, %v907, %v909
        %v924 = vsel %vm920, %v909, %v911
        %v925 = vsel %vm920, %v911, %v913
        %v926 = vsel %vm920, %v913, %v915
        %v927 = vsel %vm920, %v915, %v917
        %v928 = vsel %vm920, %v917, %v919
        %937 = vst [vmem:[#allocation3 + $0x140] sm:$0xf0] %v921
        %938 = vst [vmem:[#allocation3 + $0x148] sm:$0xf0] %v922
        %939 = vst [vmem:[#allocation3 + $0x150] sm:$0xf0] %v923
        %940 = vst [vmem:[#allocation3 + $0x158] sm:$0xf0] %v924
        %941 = vst [vmem:[#allocation3 + $0x160] sm:$0xf0] %v925
        %942 = vst [vmem:[#allocation3 + $0x168] sm:$0xf0] %v926
        %943 = vst [vmem:[#allocation3 + $0x170] sm:$0xf0] %v927
        %944 = vst [vmem:[#allocation3 + $0x178] sm:$0xf0] %v928
        %v945 = vld [vmem:[#allocation2] sm:$0xff]
        %v946 = vld [vmem:[#allocation2 + $0x8] sm:$0xff]
        %v947 = vld [vmem:[#allocation2 + $0x10] sm:$0xff]
        %v948 = vld [vmem:[#allocation2 + $0x18] sm:$0xff]
        %v949 = vld [vmem:[#allocation2 + $0x20] sm:$0xf]
        %v955 = vcombine.high %v945, %v945
        %v956 = vcombine.high %v946, %v946
        %v957 = vcombine.high %v947, %v947
        %v958 = vcombine.high %v948, %v948
        %959 = vrot.lane.b32.xlu0 %v945, 116
        %v960 = vpop.permute.xlu0 %959
        %961 = vrot.lane.b32.xlu0 %v955, 116
        %v962 = vpop.permute.xlu0 %961
        %963 = vrot.lane.b32.xlu0 %v946, 116
        %v964 = vpop.permute.xlu0 %963
        %965 = vrot.lane.b32.xlu0 %v956, 116
        %v966 = vpop.permute.xlu0 %965
        %967 = vrot.lane.b32.xlu0 %v947, 116
        %v968 = vpop.permute.xlu0 %967
        %969 = vrot.lane.b32.xlu0 %v957, 116
        %v970 = vpop.permute.xlu0 %969
        %971 = vrot.lane.b32.xlu0 %v948, 116
        %v972 = vpop.permute.xlu0 %971
        %973 = vrot.lane.b32.xlu0 %v958, 116
        %v974 = vpop.permute.xlu0 %973
        %975 = vrot.lane.b32.xlu0 %v949, 116
        %v976 = vpop.permute.xlu0 %975
        %vm977 = vcmask 949248
        %v978 = vsel %vm977, %v960, %v962
        %v979 = vsel %vm977, %v962, %v964
        %v980 = vsel %vm977, %v964, %v966
        %v981 = vsel %vm977, %v966, %v968
        %v982 = vsel %vm977, %v968, %v970
        %v983 = vsel %vm977, %v970, %v972
        %v984 = vsel %vm977, %v972, %v974
        %v985 = vsel %vm977, %v974, %v976
        %994 = vst [vmem:[#allocation3 + $0x180] sm:$0xf] %v978
        %995 = vst [vmem:[#allocation3 + $0x188] sm:$0xf] %v979
        %996 = vst [vmem:[#allocation3 + $0x190] sm:$0xf] %v980
        %997 = vst [vmem:[#allocation3 + $0x198] sm:$0xf] %v981
        %998 = vst [vmem:[#allocation3 + $0x1a0] sm:$0xf] %v982
        %999 = vst [vmem:[#allocation3 + $0x1a8] sm:$0xf] %v983
        %1000 = vst [vmem:[#allocation3 + $0x1b0] sm:$0xf] %v984
        %1001 = vst [vmem:[#allocation3 + $0x1b8] sm:$0xf] %v985
        %v1002 = vld [vmem:[#allocation2] sm:$0xff]
        %v1003 = vld [vmem:[#allocation2 + $0x8] sm:$0xff]
        %v1004 = vld [vmem:[#allocation2 + $0x10] sm:$0xff]
        %v1005 = vld [vmem:[#allocation2 + $0x18] sm:$0xff]
        %v1006 = vld [vmem:[#allocation2 + $0x20] sm:$0xf]
        %v1012 = vcombine.low %v1002, %v1002
        %v1013 = vcombine.low %v1003, %v1003
        %v1014 = vcombine.low %v1004, %v1004
        %v1015 = vcombine.low %v1005, %v1005
        %v1016 = vcombine.low %v1006, %v1006
        %1017 = vrot.lane.b32.xlu0 %v1012, 115
        %v1018 = vpop.permute.xlu0 %1017
        %1019 = vrot.lane.b32.xlu0 %v1002, 115
        %v1020 = vpop.permute.xlu0 %1019
        %1021 = vrot.lane.b32.xlu0 %v1013, 115
        %v1022 = vpop.permute.xlu0 %1021
        %1023 = vrot.lane.b32.xlu0 %v1003, 115
        %v1024 = vpop.permute.xlu0 %1023
        %1025 = vrot.lane.b32.xlu0 %v1014, 115
        %v1026 = vpop.permute.xlu0 %1025
        %1027 = vrot.lane.b32.xlu0 %v1004, 115
        %v1028 = vpop.permute.xlu0 %1027
        %1029 = vrot.lane.b32.xlu0 %v1015, 115
        %v1030 = vpop.permute.xlu0 %1029
        %1031 = vrot.lane.b32.xlu0 %v1005, 115
        %v1032 = vpop.permute.xlu0 %1031
        %1033 = vrot.lane.b32.xlu0 %v1016, 115
        %v1034 = vpop.permute.xlu0 %1033
        %vm1035 = vcmask 941056
        %v1036 = vsel %vm1035, %v1018, %v1020
        %v1037 = vsel %vm1035, %v1020, %v1022
        %v1038 = vsel %vm1035, %v1022, %v1024
        %v1039 = vsel %vm1035, %v1024, %v1026
        %v1040 = vsel %vm1035, %v1026, %v1028
        %v1041 = vsel %vm1035, %v1028, %v1030
        %v1042 = vsel %vm1035, %v1030, %v1032
        %v1043 = vsel %vm1035, %v1032, %v1034
        %1052 = vst [vmem:[#allocation3 + $0x180] sm:$0xf0] %v1036
        %1053 = vst [vmem:[#allocation3 + $0x188] sm:$0xf0] %v1037
        %1054 = vst [vmem:[#allocation3 + $0x190] sm:$0xf0] %v1038
        %1055 = vst [vmem:[#allocation3 + $0x198] sm:$0xf0] %v1039
        %1056 = vst [vmem:[#allocation3 + $0x1a0] sm:$0xf0] %v1040
        %1057 = vst [vmem:[#allocation3 + $0x1a8] sm:$0xf0] %v1041
        %1058 = vst [vmem:[#allocation3 + $0x1b0] sm:$0xf0] %v1042
        %1059 = vst [vmem:[#allocation3 + $0x1b8] sm:$0xf0] %v1043
        %v1060 = vld [vmem:[#allocation2] sm:$0xff]
        %v1061 = vld [vmem:[#allocation2 + $0x8] sm:$0xff]
        %v1062 = vld [vmem:[#allocation2 + $0x10] sm:$0xff]
        %v1063 = vld [vmem:[#allocation2 + $0x18] sm:$0xff]
        %v1064 = vld [vmem:[#allocation2 + $0x20] sm:$0xf]
        %v1070 = vcombine.high %v1060, %v1060
        %v1071 = vcombine.high %v1061, %v1061
        %v1072 = vcombine.high %v1062, %v1062
        %v1073 = vcombine.high %v1063, %v1063
        %1074 = vrot.lane.b32.xlu0 %v1060, 114
        %v1075 = vpop.permute.xlu0 %1074
        %1076 = vrot.lane.b32.xlu0 %v1070, 114
        %v1077 = vpop.permute.xlu0 %1076
        %1078 = vrot.lane.b32.xlu0 %v1061, 114
        %v1079 = vpop.permute.xlu0 %1078
        %1080 = vrot.lane.b32.xlu0 %v1071, 114
        %v1081 = vpop.permute.xlu0 %1080
        %1082 = vrot.lane.b32.xlu0 %v1062, 114
        %v1083 = vpop.permute.xlu0 %1082
        %1084 = vrot.lane.b32.xlu0 %v1072, 114
        %v1085 = vpop.permute.xlu0 %1084
        %1086 = vrot.lane.b32.xlu0 %v1063, 114
        %v1087 = vpop.permute.xlu0 %1086
        %1088 = vrot.lane.b32.xlu0 %v1073, 114
        %v1089 = vpop.permute.xlu0 %1088
        %1090 = vrot.lane.b32.xlu0 %v1064, 114
        %v1091 = vpop.permute.xlu0 %1090
        %vm1092 = vcmask 932864
        %v1093 = vsel %vm1092, %v1075, %v1077
        %v1094 = vsel %vm1092, %v1077, %v1079
        %v1095 = vsel %vm1092, %v1079, %v1081
        %v1096 = vsel %vm1092, %v1081, %v1083
        %v1097 = vsel %vm1092, %v1083, %v1085
        %v1098 = vsel %vm1092, %v1085, %v1087
        %v1099 = vsel %vm1092, %v1087, %v1089
        %v1100 = vsel %vm1092, %v1089, %v1091
        %1109 = vst [vmem:[#allocation3 + $0x1c0] sm:$0xf] %v1093
        %1110 = vst [vmem:[#allocation3 + $0x1c8] sm:$0xf] %v1094
        %1111 = vst [vmem:[#allocation3 + $0x1d0] sm:$0xf] %v1095
        %1112 = vst [vmem:[#allocation3 + $0x1d8] sm:$0xf] %v1096
        %1113 = vst [vmem:[#allocation3 + $0x1e0] sm:$0xf] %v1097
        %1114 = vst [vmem:[#allocation3 + $0x1e8] sm:$0xf] %v1098
        %1115 = vst [vmem:[#allocation3 + $0x1f0] sm:$0xf] %v1099
        %1116 = vst [vmem:[#allocation3 + $0x1f8] sm:$0xf] %v1100
        %v1117 = vld [vmem:[#allocation2] sm:$0xff]
        %v1118 = vld [vmem:[#allocation2 + $0x8] sm:$0xff]
        %v1119 = vld [vmem:[#allocation2 + $0x10] sm:$0xff]
        %v1120 = vld [vmem:[#allocation2 + $0x18] sm:$0xff]
        %v1121 = vld [vmem:[#allocation2 + $0x20] sm:$0xf]
        %v1127 = vcombine.low %v1117, %v1117
        %v1128 = vcombine.low %v1118, %v1118
        %v1129 = vcombine.low %v1119, %v1119
        %v1130 = vcombine.low %v1120, %v1120
        %v1131 = vcombine.low %v1121, %v1121
        %1132 = vrot.lane.b32.xlu0 %v1127, 113
        %v1133 = vpop.permute.xlu0 %1132
        %1134 = vrot.lane.b32.xlu0 %v1117, 113
        %v1135 = vpop.permute.xlu0 %1134
        %1136 = vrot.lane.b32.xlu0 %v1128, 113
        %v1137 = vpop.permute.xlu0 %1136
        %1138 = vrot.lane.b32.xlu0 %v1118, 113
        %v1139 = vpop.permute.xlu0 %1138
        %1140 = vrot.lane.b32.xlu0 %v1129, 113
        %v1141 = vpop.permute.xlu0 %1140
        %1142 = vrot.lane.b32.xlu0 %v1119, 113
        %v1143 = vpop.permute.xlu0 %1142
        %1144 = vrot.lane.b32.xlu0 %v1130, 113
        %v1145 = vpop.permute.xlu0 %1144
        %1146 = vrot.lane.b32.xlu0 %v1120, 113
        %v1147 = vpop.permute.xlu0 %1146
        %1148 = vrot.lane.b32.xlu0 %v1131, 113
        %v1149 = vpop.permute.xlu0 %1148
        %vm1150 = vcmask 924672
        %v1151 = vsel %vm1150, %v1133, %v1135
        %v1152 = vsel %vm1150, %v1135, %v1137
        %v1153 = vsel %vm1150, %v1137, %v1139
        %v1154 = vsel %vm1150, %v1139, %v1141
        %v1155 = vsel %vm1150, %v1141, %v1143
        %v1156 = vsel %vm1150, %v1143, %v1145
        %v1157 = vsel %vm1150, %v1145, %v1147
        %v1158 = vsel %vm1150, %v1147, %v1149
        %1167 = vst [vmem:[#allocation3 + $0x1c0] sm:$0xf0] %v1151
        %1168 = vst [vmem:[#allocation3 + $0x1c8] sm:$0xf0] %v1152
        %1169 = vst [vmem:[#allocation3 + $0x1d0] sm:$0xf0] %v1153
        %1170 = vst [vmem:[#allocation3 + $0x1d8] sm:$0xf0] %v1154
        %1171 = vst [vmem:[#allocation3 + $0x1e0] sm:$0xf0] %v1155
        %1172 = vst [vmem:[#allocation3 + $0x1e8] sm:$0xf0] %v1156
        %1173 = vst [vmem:[#allocation3 + $0x1f0] sm:$0xf0] %v1157
        %1174 = vst [vmem:[#allocation3 + $0x1f8] sm:$0xf0] %v1158
        %v1175 = vld [vmem:[#allocation9] sm:$0xf]
        %v1176 = vld [vmem:[#allocation3] sm:$0xff]
        %v1177 = vld [vmem:[#allocation3 + $0x8] sm:$0xff]
        %v1178 = vld [vmem:[#allocation3 + $0x10] sm:$0xff]
        %v1179 = vld [vmem:[#allocation3 + $0x18] sm:$0xff]
        %v1180 = vld [vmem:[#allocation3 + $0x20] sm:$0xff]
        %v1181 = vld [vmem:[#allocation3 + $0x28] sm:$0xff]
        %v1182 = vld [vmem:[#allocation3 + $0x30] sm:$0xff]
        %v1183 = vld [vmem:[#allocation3 + $0x38] sm:$0xff]
        %v1184 = vld [vmem:[#allocation3 + $0x40] sm:$0xff]
        %v1185 = vld [vmem:[#allocation3 + $0x48] sm:$0xff]
        %v1186 = vld [vmem:[#allocation3 + $0x50] sm:$0xff]
        %v1187 = vld [vmem:[#allocation3 + $0x58] sm:$0xff]
        %v1188 = vld [vmem:[#allocation3 + $0x60] sm:$0xff]
        %v1189 = vld [vmem:[#allocation3 + $0x68] sm:$0xff]
        %v1190 = vld [vmem:[#allocation3 + $0x70] sm:$0xff]
        %v1191 = vld [vmem:[#allocation3 + $0x78] sm:$0xff]
        %v1192 = vld [vmem:[#allocation3 + $0x80] sm:$0xff]
        %v1193 = vld [vmem:[#allocation3 + $0x88] sm:$0xff]
        %v1194 = vld [vmem:[#allocation3 + $0x90] sm:$0xff]
        %v1195 = vld [vmem:[#allocation3 + $0x98] sm:$0xff]
        %v1196 = vld [vmem:[#allocation3 + $0xa0] sm:$0xff]
        %v1197 = vld [vmem:[#allocation3 + $0xa8] sm:$0xff]
        %v1198 = vld [vmem:[#allocation3 + $0xb0] sm:$0xff]
        %v1199 = vld [vmem:[#allocation3 + $0xb8] sm:$0xff]
        %v1200 = vld [vmem:[#allocation3 + $0xc0] sm:$0xff]
        %v1201 = vld [vmem:[#allocation3 + $0xc8] sm:$0xff]
        %v1202 = vld [vmem:[#allocation3 + $0xd0] sm:$0xff]
        %v1203 = vld [vmem:[#allocation3 + $0xd8] sm:$0xff]
        %v1204 = vld [vmem:[#allocation3 + $0xe0] sm:$0xff]
        %v1205 = vld [vmem:[#allocation3 + $0xe8] sm:$0xff]
        %v1206 = vld [vmem:[#allocation3 + $0xf0] sm:$0xff]
        %v1207 = vld [vmem:[#allocation3 + $0xf8] sm:$0xff]
        %v1208 = vld [vmem:[#allocation3 + $0x100] sm:$0xff]
        %v1209 = vld [vmem:[#allocation3 + $0x108] sm:$0xff]
        %v1210 = vld [vmem:[#allocation3 + $0x110] sm:$0xff]
        %v1211 = vld [vmem:[#allocation3 + $0x118] sm:$0xff]
        %v1212 = vld [vmem:[#allocation3 + $0x120] sm:$0xff]
        %v1213 = vld [vmem:[#allocation3 + $0x128] sm:$0xff]
        %v1214 = vld [vmem:[#allocation3 + $0x130] sm:$0xff]
        %v1215 = vld [vmem:[#allocation3 + $0x138] sm:$0xff]
        %v1216 = vld [vmem:[#allocation3 + $0x140] sm:$0xff]
        %v1217 = vld [vmem:[#allocation3 + $0x148] sm:$0xff]
        %v1218 = vld [vmem:[#allocation3 + $0x150] sm:$0xff]
        %v1219 = vld [vmem:[#allocation3 + $0x158] sm:$0xff]
        %v1220 = vld [vmem:[#allocation3 + $0x160] sm:$0xff]
        %v1221 = vld [vmem:[#allocation3 + $0x168] sm:$0xff]
        %v1222 = vld [vmem:[#allocation3 + $0x170] sm:$0xff]
        %v1223 = vld [vmem:[#allocation3 + $0x178] sm:$0xff]
        %v1224 = vld [vmem:[#allocation3 + $0x180] sm:$0xff]
        %v1225 = vld [vmem:[#allocation3 + $0x188] sm:$0xff]
        %v1226 = vld [vmem:[#allocation3 + $0x190] sm:$0xff]
        %v1227 = vld [vmem:[#allocation3 + $0x198] sm:$0xff]
        %v1228 = vld [vmem:[#allocation3 + $0x1a0] sm:$0xff]
        %v1229 = vld [vmem:[#allocation3 + $0x1a8] sm:$0xff]
        %v1230 = vld [vmem:[#allocation3 + $0x1b0] sm:$0xff]
        %v1231 = vld [vmem:[#allocation3 + $0x1b8] sm:$0xff]
        %v1232 = vld [vmem:[#allocation3 + $0x1c0] sm:$0xff]
        %v1233 = vld [vmem:[#allocation3 + $0x1c8] sm:$0xff]
        %v1234 = vld [vmem:[#allocation3 + $0x1d0] sm:$0xff]
        %v1235 = vld [vmem:[#allocation3 + $0x1d8] sm:$0xff]
        %v1236 = vld [vmem:[#allocation3 + $0x1e0] sm:$0xff]
        %v1237 = vld [vmem:[#allocation3 + $0x1e8] sm:$0xff]
        %v1238 = vld [vmem:[#allocation3 + $0x1f0] sm:$0xff]
        %v1239 = vld [vmem:[#allocation3 + $0x1f8] sm:$0xff]
        %vm1240 = vcmask 523264
        %v1242 = vsel %vm1240, %v1175, 0
        %1244 = vmatprep.subr.mxu0 0.0
        %1245 = vmatpush1.msra.mxu0 0.0
        %1246 = vmatprep.subr.mxu0 0.0
        %1247 = vmatpush1.msra.mxu0 0.0
        %1248 = vmatprep.subr.mxu0 0.0
        %1249 = vmatpush1.msra.mxu0 0.0
        %1250 = vmatprep.subr.mxu0 0.0
        %1251 = vmatpush1.msra.mxu0 0.0
        %1252 = vmatprep.subr.mxu0 0.0
        %1253 = vmatpush1.msra.mxu0 0.0
        %1254 = vmatprep.subr.mxu0 0.0
        %1255 = vmatpush1.msra.mxu0 0.0
        %1256 = vmatprep.subr.mxu0 0.0
        %1257 = vmatpush1.msra.mxu0 0.0
        %1258 = vmatprep.subr.mxu0 0.0
        %1259 = vmatpush1.msra.mxu0 0.0
        %1260 = vmatprep.subr.mxu0 %v1233
        %1261 = vmatpush1.msra.mxu0 %v1232
        %1262 = vmatprep.subr.mxu0 %v1225
        %1263 = vmatpush1.msra.mxu0 %v1224
        %1264 = vmatprep.subr.mxu0 %v1217
        %1265 = vmatpush1.msra.mxu0 %v1216
        %1266 = vmatprep.subr.mxu0 %v1209
        %1267 = vmatpush1.msra.mxu0 %v1208
        %1268 = vmatprep.subr.mxu0 %v1201
        %1269 = vmatpush1.msra.mxu0 %v1200
        %1270 = vmatprep.subr.mxu0 %v1193
        %1271 = vmatpush1.msra.mxu0 %v1192
        %1272 = vmatprep.subr.mxu0 %v1185
        %1273 = vmatpush1.msra.mxu0 %v1184
        %1274 = vmatprep.subr.mxu0 %v1177
        %1275 = vmatpush1.msra.mxu0 %v1176
        %1276 = vmatprep.subr.mxu0 0.0
        %1277 = vmatpush2.msra.mxu0 0.0
        %1278 = vmatprep.subr.mxu0 0.0
        %1279 = vmatpush2.msra.mxu0 0.0
        %1280 = vmatprep.subr.mxu0 0.0
        %1281 = vmatpush2.msra.mxu0 0.0
        %1282 = vmatprep.subr.mxu0 0.0
        %1283 = vmatpush2.msra.mxu0 0.0
        %1284 = vmatprep.subr.mxu0 0.0
        %1285 = vmatpush2.msra.mxu0 0.0
        %1286 = vmatprep.subr.mxu0 0.0
        %1287 = vmatpush2.msra.mxu0 0.0
        %1288 = vmatprep.subr.mxu0 0.0
        %1289 = vmatpush2.msra.mxu0 0.0
        %1290 = vmatprep.subr.mxu0 0.0
        %1291 = vmatpush2.msra.mxu0 0.0
        %1292 = vmatprep.subr.mxu0 0.0
        %1293 = vmatpush2.msra.mxu0 0.0
        %1294 = vmatprep.subr.mxu0 0.0
        %1295 = vmatpush2.msra.mxu0 0.0
        %1296 = vmatprep.subr.mxu0 0.0
        %1297 = vmatpush2.msra.mxu0 0.0
        %1298 = vmatprep.subr.mxu0 0.0
        %1299 = vmatpush2.msra.mxu0 0.0
        %1300 = vmatprep.subr.mxu0 0.0
        %1301 = vmatpush2.msra.mxu0 0.0
        %1302 = vmatprep.subr.mxu0 0.0
        %1303 = vmatpush2.msra.mxu0 0.0
        %1304 = vmatprep.subr.mxu0 0.0
        %1305 = vmatpush2.msra.mxu0 0.0
        %1306 = vmatprep.subr.mxu0 0.0
        %1307 = vmatpush2.msra.mxu0 0.0
        %1308 = vmatprep.mubr.f32.mxu0 0.0
        %1309 = vmatmul.mubr.f32.gmra.mxu0 %v1242
        %v1310 = vpop.f32.mrf.mxu0
        %v1311 = vadd.f32 0.0, %v1310
        %v1312 = vpop.f32.mrf.mxu0
        %v1313 = vadd.f32 0.0, %v1312
        %1314 = vdwg.mxu0
        %1315 = vmatprep.subr.mxu0 0.0
        %1316 = vmatpush1.msra.mxu0 0.0
        %1317 = vmatprep.subr.mxu0 0.0
        %1318 = vmatpush1.msra.mxu0 0.0
        %1319 = vmatprep.subr.mxu0 0.0
        %1320 = vmatpush1.msra.mxu0 0.0
        %1321 = vmatprep.subr.mxu0 0.0
        %1322 = vmatpush1.msra.mxu0 0.0
        %1323 = vmatprep.subr.mxu0 0.0
        %1324 = vmatpush1.msra.mxu0 0.0
        %1325 = vmatprep.subr.mxu0 0.0
        %1326 = vmatpush1.msra.mxu0 0.0
        %1327 = vmatprep.subr.mxu0 0.0
        %1328 = vmatpush1.msra.mxu0 0.0
        %1329 = vmatprep.subr.mxu0 0.0
        %1330 = vmatpush1.msra.mxu0 0.0
        %1331 = vmatprep.subr.mxu0 %v1235
        %1332 = vmatpush1.msra.mxu0 %v1234
        %1333 = vmatprep.subr.mxu0 %v1227
        %1334 = vmatpush1.msra.mxu0 %v1226
        %1335 = vmatprep.subr.mxu0 %v1219
        %1336 = vmatpush1.msra.mxu0 %v1218
        %1337 = vmatprep.subr.mxu0 %v1211
        %1338 = vmatpush1.msra.mxu0 %v1210
        %1339 = vmatprep.subr.mxu0 %v1203
        %1340 = vmatpush1.msra.mxu0 %v1202
        %1341 = vmatprep.subr.mxu0 %v1195
        %1342 = vmatpush1.msra.mxu0 %v1194
        %1343 = vmatprep.subr.mxu0 %v1187
        %1344 = vmatpush1.msra.mxu0 %v1186
        %1345 = vmatprep.subr.mxu0 %v1179
        %1346 = vmatpush1.msra.mxu0 %v1178
        %1347 = vmatprep.subr.mxu0 0.0
        %1348 = vmatpush2.msra.mxu0 0.0
        %1349 = vmatprep.subr.mxu0 0.0
        %1350 = vmatpush2.msra.mxu0 0.0
        %1351 = vmatprep.subr.mxu0 0.0
        %1352 = vmatpush2.msra.mxu0 0.0
        %1353 = vmatprep.subr.mxu0 0.0
        %1354 = vmatpush2.msra.mxu0 0.0
        %1355 = vmatprep.subr.mxu0 0.0
        %1356 = vmatpush2.msra.mxu0 0.0
        %1357 = vmatprep.subr.mxu0 0.0
        %1358 = vmatpush2.msra.mxu0 0.0
        %1359 = vmatprep.subr.mxu0 0.0
        %1360 = vmatpush2.msra.mxu0 0.0
        %1361 = vmatprep.subr.mxu0 0.0
        %1362 = vmatpush2.msra.mxu0 0.0
        %1363 = vmatprep.subr.mxu0 0.0
        %1364 = vmatpush2.msra.mxu0 0.0
        %1365 = vmatprep.subr.mxu0 0.0
        %1366 = vmatpush2.msra.mxu0 0.0
        %1367 = vmatprep.subr.mxu0 0.0
        %1368 = vmatpush2.msra.mxu0 0.0
        %1369 = vmatprep.subr.mxu0 0.0
        %1370 = vmatpush2.msra.mxu0 0.0
        %1371 = vmatprep.subr.mxu0 0.0
        %1372 = vmatpush2.msra.mxu0 0.0
        %1373 = vmatprep.subr.mxu0 0.0
        %1374 = vmatpush2.msra.mxu0 0.0
        %1375 = vmatprep.subr.mxu0 0.0
        %1376 = vmatpush2.msra.mxu0 0.0
        %1377 = vmatprep.subr.mxu0 0.0
        %1378 = vmatpush2.msra.mxu0 0.0
        %1379 = vmatprep.mubr.f32.mxu0 0.0
        %1380 = vmatmul.mubr.f32.gmra.mxu0 %v1242
        %v1381 = vpop.f32.mrf.mxu0
        %v1382 = vadd.f32 0.0, %v1381
        %v1383 = vpop.f32.mrf.mxu0
        %v1384 = vadd.f32 0.0, %v1383
        %1385 = vdwg.mxu0
        %1386 = vmatprep.subr.mxu0 0.0
        %1387 = vmatpush1.msra.mxu0 0.0
        %1388 = vmatprep.subr.mxu0 0.0
        %1389 = vmatpush1.msra.mxu0 0.0
        %1390 = vmatprep.subr.mxu0 0.0
        %1391 = vmatpush1.msra.mxu0 0.0
        %1392 = vmatprep.subr.mxu0 0.0
        %1393 = vmatpush1.msra.mxu0 0.0
        %1394 = vmatprep.subr.mxu0 0.0
        %1395 = vmatpush1.msra.mxu0 0.0
        %1396 = vmatprep.subr.mxu0 0.0
        %1397 = vmatpush1.msra.mxu0 0.0
        %1398 = vmatprep.subr.mxu0 0.0
        %1399 = vmatpush1.msra.mxu0 0.0
        %1400 = vmatprep.subr.mxu0 0.0
        %1401 = vmatpush1.msra.mxu0 0.0
        %1402 = vmatprep.subr.mxu0 %v1237
        %1403 = vmatpush1.msra.mxu0 %v1236
        %1404 = vmatprep.subr.mxu0 %v1229
        %1405 = vmatpush1.msra.mxu0 %v1228
        %1406 = vmatprep.subr.mxu0 %v1221
        %1407 = vmatpush1.msra.mxu0 %v1220
        %1408 = vmatprep.subr.mxu0 %v1213
        %1409 = vmatpush1.msra.mxu0 %v1212
        %1410 = vmatprep.subr.mxu0 %v1205
        %1411 = vmatpush1.msra.mxu0 %v1204
        %1412 = vmatprep.subr.mxu0 %v1197
        %1413 = vmatpush1.msra.mxu0 %v1196
        %1414 = vmatprep.subr.mxu0 %v1189
        %1415 = vmatpush1.msra.mxu0 %v1188
        %1416 = vmatprep.subr.mxu0 %v1181
        %1417 = vmatpush1.msra.mxu0 %v1180
        %1418 = vmatprep.subr.mxu0 0.0
        %1419 = vmatpush2.msra.mxu0 0.0
        %1420 = vmatprep.subr.mxu0 0.0
        %1421 = vmatpush2.msra.mxu0 0.0
        %1422 = vmatprep.subr.mxu0 0.0
        %1423 = vmatpush2.msra.mxu0 0.0
        %1424 = vmatprep.subr.mxu0 0.0
        %1425 = vmatpush2.msra.mxu0 0.0
        %1426 = vmatprep.subr.mxu0 0.0
        %1427 = vmatpush2.msra.mxu0 0.0
        %1428 = vmatprep.subr.mxu0 0.0
        %1429 = vmatpush2.msra.mxu0 0.0
        %1430 = vmatprep.subr.mxu0 0.0
        %1431 = vmatpush2.msra.mxu0 0.0
        %1432 = vmatprep.subr.mxu0 0.0
        %1433 = vmatpush2.msra.mxu0 0.0
        %1434 = vmatprep.subr.mxu0 0.0
        %1435 = vmatpush2.msra.mxu0 0.0
        %1436 = vmatprep.subr.mxu0 0.0
        %1437 = vmatpush2.msra.mxu0 0.0
        %1438 = vmatprep.subr.mxu0 0.0
        %1439 = vmatpush2.msra.mxu0 0.0
        %1440 = vmatprep.subr.mxu0 0.0
        %1441 = vmatpush2.msra.mxu0 0.0
        %1442 = vmatprep.subr.mxu0 0.0
        %1443 = vmatpush2.msra.mxu0 0.0
        %1444 = vmatprep.subr.mxu0 0.0
        %1445 = vmatpush2.msra.mxu0 0.0
        %1446 = vmatprep.subr.mxu0 0.0
        %1447 = vmatpush2.msra.mxu0 0.0
        %1448 = vmatprep.subr.mxu0 0.0
        %1449 = vmatpush2.msra.mxu0 0.0
        %1450 = vmatprep.mubr.f32.mxu0 0.0
        %1451 = vmatmul.mubr.f32.gmra.mxu0 %v1242
        %v1452 = vpop.f32.mrf.mxu0
        %v1453 = vadd.f32 0.0, %v1452
        %v1454 = vpop.f32.mrf.mxu0
        %v1455 = vadd.f32 0.0, %v1454
        %1456 = vdwg.mxu0
        %1457 = vmatprep.subr.mxu0 0.0
        %1458 = vmatpush1.msra.mxu0 0.0
        %1459 = vmatprep.subr.mxu0 0.0
        %1460 = vmatpush1.msra.mxu0 0.0
        %1461 = vmatprep.subr.mxu0 0.0
        %1462 = vmatpush1.msra.mxu0 0.0
        %1463 = vmatprep.subr.mxu0 0.0
        %1464 = vmatpush1.msra.mxu0 0.0
        %1465 = vmatprep.subr.mxu0 0.0
        %1466 = vmatpush1.msra.mxu0 0.0
        %1467 = vmatprep.subr.mxu0 0.0
        %1468 = vmatpush1.msra.mxu0 0.0
        %1469 = vmatprep.subr.mxu0 0.0
        %1470 = vmatpush1.msra.mxu0 0.0
        %1471 = vmatprep.subr.mxu0 0.0
        %1472 = vmatpush1.msra.mxu0 0.0
        %1473 = vmatprep.subr.mxu0 %v1239
        %1474 = vmatpush1.msra.mxu0 %v1238
        %1475 = vmatprep.subr.mxu0 %v1231
        %1476 = vmatpush1.msra.mxu0 %v1230
        %1477 = vmatprep.subr.mxu0 %v1223
        %1478 = vmatpush1.msra.mxu0 %v1222
        %1479 = vmatprep.subr.mxu0 %v1215
        %1480 = vmatpush1.msra.mxu0 %v1214
        %1481 = vmatprep.subr.mxu0 %v1207
        %1482 = vmatpush1.msra.mxu0 %v1206
        %1483 = vmatprep.subr.mxu0 %v1199
        %1484 = vmatpush1.msra.mxu0 %v1198
        %1485 = vmatprep.subr.mxu0 %v1191
        %1486 = vmatpush1.msra.mxu0 %v1190
        %1487 = vmatprep.subr.mxu0 %v1183
        %1488 = vmatpush1.msra.mxu0 %v1182
        %1489 = vmatprep.subr.mxu0 0.0
        %1490 = vmatpush2.msra.mxu0 0.0
        %1491 = vmatprep.subr.mxu0 0.0
        %1492 = vmatpush2.msra.mxu0 0.0
        %1493 = vmatprep.subr.mxu0 0.0
        %1494 = vmatpush2.msra.mxu0 0.0
        %1495 = vmatprep.subr.mxu0 0.0
        %1496 = vmatpush2.msra.mxu0 0.0
        %1497 = vmatprep.subr.mxu0 0.0
        %1498 = vmatpush2.msra.mxu0 0.0
        %1499 = vmatprep.subr.mxu0 0.0
        %1500 = vmatpush2.msra.mxu0 0.0
        %1501 = vmatprep.subr.mxu0 0.0
        %1502 = vmatpush2.msra.mxu0 0.0
        %1503 = vmatprep.subr.mxu0 0.0
        %1504 = vmatpush2.msra.mxu0 0.0
        %1505 = vmatprep.subr.mxu0 0.0
        %1506 = vmatpush2.msra.mxu0 0.0
        %1507 = vmatprep.subr.mxu0 0.0
        %1508 = vmatpush2.msra.mxu0 0.0
        %1509 = vmatprep.subr.mxu0 0.0
        %1510 = vmatpush2.msra.mxu0 0.0
        %1511 = vmatprep.subr.mxu0 0.0
        %1512 = vmatpush2.msra.mxu0 0.0
        %1513 = vmatprep.subr.mxu0 0.0
        %1514 = vmatpush2.msra.mxu0 0.0
        %1515 = vmatprep.subr.mxu0 0.0
        %1516 = vmatpush2.msra.mxu0 0.0
        %1517 = vmatprep.subr.mxu0 0.0
        %1518 = vmatpush2.msra.mxu0 0.0
        %1519 = vmatprep.subr.mxu0 0.0
        %1520 = vmatpush2.msra.mxu0 0.0
        %1521 = vmatprep.mubr.f32.mxu0 0.0
        %1522 = vmatmul.mubr.f32.gmra.mxu0 %v1242
        %v1523 = vpop.f32.mrf.mxu0
        %v1524 = vadd.f32 0.0, %v1523
        %v1525 = vpop.f32.mrf.mxu0
        %v1526 = vadd.f32 0.0, %v1525
        %1527 = vdwg.mxu0
        %v1536 = vcombine.low %v1311, %v1313
        %v1537 = vcombine.low %v1382, %v1384
        %v1538 = vcombine.low %v1453, %v1455
        %v1539 = vcombine.low %v1524, %v1526
        %1544 = vst [vmem:[%s269] sm:$0xff] %v1536
        %1545 = vst [vmem:[%s269 + $0x8] sm:$0xff] %v1537
        %1546 = vst [vmem:[%s269 + $0x10] sm:$0xff] %v1538
        %1547 = vst [vmem:[%s269 + $0x18] sm:$0xff] %v1539
        %s1548 = sand.u32 %s126, 1
        %s1549 = scalar_lea.sflag [#allocation6], %s1548
        %s1550 = sand.u32 %s126, 1
        %s1551 = smul.addr %s1550, 32
        %s1552 = scalar_lea.vmem [#allocation10], %s1551
        // Predicated region
        $region45: #{tpu_custom_call.1} parent=31 // pred_check
          %p1553 = pneg %p136
        $region46: #{tpu_custom_call.1} parent=31 // pred_check_branch
          %1555 = sbr.rel (%p1553) target = $region48
        $region47: #{tpu_custom_call.1} parent=31 // pred_region
          %s1556 = smul.u32 8, %s28
          %s1558 = ssub.s32 512, 512
          %1559 = vsyncadd %s1549, %s1558
          %s1560 = smul.addr %s27, 32
          %s1561 = sadd.s32 %s1556, %s1560
          %s1562 = smul.addr %s1561, 64
          %s1563 = scalar_lea.hbm %s3, %s1562
          %s1565 = sshll.u32 %s1552, 4
          %s1566 = int_to_ptr.vmem [resolvable:$true] %s1565
          %1568 = dma.vmem_to_hbm [thread:$0]  %s1566, 512, %s1563, %s1549
        $region48: #{tpu_custom_call.1} parent=31 // pred_fallthru
          _
      $region32: #{tpu_custom_call.1} parent=5 // pred_fallthru
        _
      %p1569 = scmp.le.s32.totalorder 2, %s18
      // Predicated region
      $region49: #{tpu_custom_call.1} parent=5 // pred_check
        %p1570 = pneg %p1569
      $region50: #{tpu_custom_call.1} parent=5 // pred_check_branch
        %1572 = sbr.rel (%p1570) target = $region52
      $region51: #{tpu_custom_call.1} parent=5 // pred_region
        %s1573 = ssub.s32 %s18, 2
        // Predicated region
        $region53: #{tpu_custom_call.1} parent=51 // pred_check
          %p1574 = pneg %p142
        $region54: #{tpu_custom_call.1} parent=51 // pred_check_branch
          %1576 = sbr.rel (%p1574) target = $region56
        $region55: #{tpu_custom_call.1} parent=51 // pred_region
          %s1577 = sand.u32 %s127, 1
          %s1578 = scalar_lea.sflag [#allocation6], %s1577
          %s1579 = sand.u32 %s127, 1
          %s1580 = smul.addr %s1579, 32
          %s1581 = scalar_lea.vmem [#allocation10], %s1580
          %1582 = dma.done %s1578, 512
        $region56: #{tpu_custom_call.1} parent=51 // pred_fallthru
          _
      $region52: #{tpu_custom_call.1} parent=5 // pred_fallthru
        _
    $region6: #{tpu_custom_call.1} parent=1 // loop_footer
      %s22 = sadd.s32 1, %s18
    $region7: #{tpu_custom_call.1} parent=1 // loop_footer_branch
      %17 = sbr.rel target = $region3
    $region8: #{tpu_custom_call.1} parent=1 // loop_exit
      _
    %1583 = vsyncpa [#allocation5], 1
    %s1584 = scalar_lea.sflag [#allocation5], 1
    %1585 = vsyncpa %s1584, 1
    %1586 = vsyncpa [#allocation8], 1
    %s1587 = scalar_lea.sflag [#allocation8], 1
    %1588 = vsyncpa %s1587, 1
    %1589 = vsyncpa [#allocation6], 1
    %s1590 = scalar_lea.sflag [#allocation6], 1
    %1591 = vsyncpa %s1590, 1

</llo_original>
